<compile_context>
chip_gen: v5e
topology: v5e:2x2
jax: 0.10.0
libtpu: 0.0.40
codegen_flags: <defaults>
</compile_context>

<pallas_src>
import math
import functools

import jax
import jax.numpy as jnp
from jax import lax
from jax.experimental import pallas as pl
from jax.experimental.pallas import tpu as pltpu


# ------------------------------- tiling utils -------------------------------

# Scoped-VMEM request: comfortably above the 16/32 MiB defaults, below v7x's
# 64 MiB physical VMEM, and far below v5e/v6e's 128 MiB.
_VMEM_LIMIT = 48 * 1024 * 1024

_INV_SQRT2 = 1.0 / math.sqrt(2.0)
_LN_EPS = 1e-12


def _tile(dim, cap, align):
    """Largest tile <= cap that divides dim, preferring `align` multiples.

    NOTE: for arbitrary dims with no aligned divisor this falls back to any
    divisor (fine for standard BERT shapes: 768 / 3072 / 2304 / B*S)."""
    if dim <= cap:
        return dim
    t = (cap // align) * align
    while t >= align:
        if dim % t == 0:
            return t
        t -= align
    for t in range(cap, 0, -1):
        if dim % t == 0:
            return t
    return dim


def _linear_tiles(M, K, N, fuse_ln, out_bytes):
    """Generation-friendly tile selection for the fused linear kernel."""
    tm = _tile(M, 512, 16)                          # 16 rows = bf16 sublane pack
    tk = K if K <= 1024 else _tile(K, 1024, 256)    # full-K for BERT-base (768)
    tn = N if fuse_ln else _tile(N, 512, 256)       # 256-align feeds 256-wide MXU

    def vmem_bytes(tm_, tk_, tn_):
        per_buf = (tm_ * tk_ * 2 + tk_ * tn_ * 2 + tm_ * tn_ * out_bytes
                   + (tm_ * tn_ * 2 if fuse_ln else 0) + 3 * tn_ * 4)
        return 2 * per_buf + tm_ * tn_ * 4          # double buffering + f32 acc

    # Shrink K tiling first (per v7x guidance), then M, if the working set
    # would blow the VMEM budget.  Rarely triggers at BERT shapes.
    while (vmem_bytes(tm, tk, tn) > _VMEM_LIMIT // 2 and tk > 256
           and tk % 2 == 0 and K % (tk // 2) == 0):
        tk //= 2
    while (vmem_bytes(tm, tk, tn) > _VMEM_LIMIT // 2 and tm > 16
           and tm % 2 == 0 and M % (tm // 2) == 0):
        tm //= 2
    return tm, tk, tn


# -------------------------- fused tiled linear kernel ------------------------

def _mm_kernel(act):
    """matmul + bias (+ GELU / tanh) with K-axis accumulation."""
    def kernel(x_ref, w_ref, b_ref, o_ref, acc_ref):
        @pl.when(pl.program_id(2) == 0)
        def _():
            acc_ref[...] = jnp.zeros_like(acc_ref)

        acc_ref[...] += jnp.dot(x_ref[...], w_ref[...],
                                preferred_element_type=jnp.float32)

        @pl.when(pl.program_id(2) == pl.num_programs(2) - 1)
        def _():
            y = acc_ref[...] + b_ref[...]
            if act == "gelu":          # exact (erf) GELU, f32 epilogue
                y = 0.5 * y * (1.0 + lax.erf(y * _INV_SQRT2))
            elif act == "tanh":
                y = jnp.tanh(y)
            o_ref[...] = y.astype(o_ref.dtype)
    return kernel


def _mm_add_ln_kernel(x_ref, w_ref, b_ref, r_ref, g_ref, be_ref, o_ref, acc_ref):
    """matmul + bias + residual add + LayerNorm epilogue (needs tn == N)."""
    @pl.when(pl.program_id(2) == 0)
    def _():
        acc_ref[...] = jnp.zeros_like(acc_ref)

    acc_ref[...] += jnp.dot(x_ref[...], w_ref[...],
                            preferred_element_type=jnp.float32)

    @pl.when(pl.program_id(2) == pl.num_programs(2) - 1)
    def _():
        y = acc_ref[...] + b_ref[...] + r_ref[...].astype(jnp.float32)
        mean = jnp.mean(y, axis=-1, keepdims=True)
        var = jnp.mean(jnp.square(y - mean), axis=-1, keepdims=True)
        inv = lax.rsqrt(var + _LN_EPS)
        o_ref[...] = ((y - mean) * inv * g_ref[...] + be_ref[...]).astype(o_ref.dtype)


def pallas_linear(x, w, b, *, act=None, residual=None, ln=None,
                  out_dtype=jnp.bfloat16):
    """y = epilogue(x @ w + b); bf16 MXU operands, f32 accumulation.

    epilogue: optional GELU/tanh, or (residual add + LayerNorm) if `residual`
    and `ln=(gamma, beta)` are given (then the full N is kept in one tile).
    Weights/activations are expected to already be bf16 (prepare_params /
    previous kernel output); the astype calls below are then no-ops.
    """
    M, K = x.shape
    N = w.shape[1]
    fuse_ln = ln is not None
    out_bytes = jnp.dtype(out_dtype).itemsize

    tm, tk, tn = _linear_tiles(M, K, N, fuse_ln, out_bytes)
    gm, gn, gk = M // tm, N // tn, K // tk

    xb = x.astype(jnp.bfloat16)          # no-op for bf16 activations
    wb = w.astype(jnp.bfloat16)          # no-op: params pre-cast by prepare_params
    b2 = b.reshape(1, N).astype(jnp.float32)

    x_spec = pl.BlockSpec((tm, tk), lambda i, j, k: (i, k))
    w_spec = pl.BlockSpec((tk, tn), lambda i, j, k: (k, j))
    v_spec = pl.BlockSpec((1, tn), lambda i, j, k: (0, j))      # bias/gamma/beta
    o_spec = pl.BlockSpec((tm, tn), lambda i, j, k: (i, j))

    if fuse_ln:
        gamma, beta = ln
        args = (xb, wb, b2,
                residual.astype(jnp.bfloat16),
                gamma.reshape(1, N).astype(jnp.float32),
                beta.reshape(1, N).astype(jnp.float32))
        in_specs = [x_spec, w_spec, v_spec,
                    pl.BlockSpec((tm, tn), lambda i, j, k: (i, j)),
                    v_spec, v_spec]
        kernel = _mm_add_ln_kernel
    else:
        args = (xb, wb, b2)
        in_specs = [x_spec, w_spec, v_spec]
        kernel = _mm_kernel(act)

    return pl.pallas_call(
        kernel,
        out_shape=jax.ShapeDtypeStruct((M, N), out_dtype),
        grid_spec=pltpu.PrefetchScalarGridSpec(
            num_scalar_prefetch=0,
            grid=(gm, gn, gk),
            in_specs=in_specs,
            out_specs=o_spec,
            scratch_shapes=[pltpu.VMEM((tm, tn), jnp.float32)]),
        compiler_params=pltpu.CompilerParams(
            dimension_semantics=("parallel", "parallel", "arbitrary"),
            vmem_limit_bytes=_VMEM_LIMIT),
    )(*args)


# ------------------------------ LayerNorm kernel -----------------------------

def _ln_kernel(x_ref, g_ref, b_ref, o_ref):
    x = x_ref[...].astype(jnp.float32)
    mean = jnp.mean(x, axis=-1, keepdims=True)
    var = jnp.mean(jnp.square(x - mean), axis=-1, keepdims=True)
    inv = lax.rsqrt(var + _LN_EPS)
    o_ref[...] = ((x - mean) * inv * g_ref[...] + b_ref[...]).astype(o_ref.dtype)


def pallas_layernorm(x, gamma, beta, out_dtype=jnp.bfloat16):
    """Row-tiled pure LayerNorm (embeddings)."""
    M, H = x.shape
    tm = _tile(M, 512, 8)
    return pl.pallas_call(
        _ln_kernel,
        out_shape=jax.ShapeDtypeStruct((M, H), out_dtype),
        grid_spec=pltpu.PrefetchScalarGridSpec(
            num_scalar_prefetch=0,
            grid=(M // tm,),
            in_specs=[pl.BlockSpec((tm, H), lambda i: (i, 0)),
                      pl.BlockSpec((1, H), lambda i: (0, 0)),
                      pl.BlockSpec((1, H), lambda i: (0, 0))],
            out_specs=pl.BlockSpec((tm, H), lambda i: (i, 0))),
        compiler_params=pltpu.CompilerParams(
            dimension_semantics=("parallel",)),
    )(x.astype(jnp.float32),
      gamma.reshape(1, H).astype(jnp.float32),
      beta.reshape(1, H).astype(jnp.float32))


# ------------------------------ attention kernel -----------------------------

def _attn_kernel(q_ref, k_ref, v_ref, m_ref, o_ref, m_sc, l_sc, acc_sc, *, scale):
    """One (batch, head) pair, one KV block: flash-style online softmax."""
    kv = pl.program_id(2)

    @pl.when(kv == 0)
    def _():
        m_sc[...] = jnp.full_like(m_sc, -jnp.inf)
        l_sc[...] = jnp.zeros_like(l_sc)
        acc_sc[...] = jnp.zeros_like(acc_sc)

    q = q_ref[...]                                   # (S, Dh)  bf16
    k = k_ref[...]                                   # (tkv, Dh) bf16
    # contract over Dh without materializing k.T
    s = lax.dot_general(q, k, (((1,), (1,)), ((), ())),
                        preferred_element_type=jnp.float32) * scale   # (S, tkv)
    s = s + m_ref[...]                               # additive mask (1, tkv)

    m_new = jnp.maximum(m_sc[...], jnp.max(s, axis=-1, keepdims=True))
    alpha = jnp.exp(m_sc[...] - m_new)
    p = jnp.exp(s - m_new)
    l_sc[...] = alpha * l_sc[...] + jnp.sum(p, axis=-1, keepdims=True)
    acc_sc[...] = alpha * acc_sc[...] + jnp.dot(p.astype(v_ref.dtype), v_ref[...],
                                                preferred_element_type=jnp.float32)
    m_sc[...] = m_new

    @pl.when(kv == pl.num_programs(2) - 1)
    def _():
        o_ref[...] = (acc_sc[...] *
                      pl.reciprocal(l_sc[...], approx=True)).astype(o_ref.dtype)


def pallas_attention(qkv_h, add_mask):
    """Multi-head scaled-dot-product attention, heads on the grid.

    qkv_h    : (B, NH, 3, S, Dh) bf16 — head-major fused Q|K|V.
    add_mask : (B, 1, S) f32 additive mask (0 keep, -1e4 masked).
    returns  : (B, NH, S, Dh) bf16.
    """
    B, NH, _, S, Dh = qkv_h.shape
    scale = 1.0 / math.sqrt(Dh)
    tkv = S if S <= 512 else _tile(S, 512, 128)      # 128-aligned KV blocks
    nkv = S // tkv

    kernel = functools.partial(_attn_kernel, scale=scale)

    q_spec = pl.BlockSpec((None, None, None, S, Dh),
                          lambda b, h, kv: (b, h, 0, 0, 0))
    k_spec = pl.BlockSpec((None, None, None, tkv, Dh),
                          lambda b, h, kv: (b, h, 1, kv, 0))
    v_spec = pl.BlockSpec((None, None, None, tkv, Dh),
                          lambda b, h, kv: (b, h, 2, kv, 0))
    m_spec = pl.BlockSpec((None, 1, tkv), lambda b, h, kv: (b, 0, kv))
    o_spec = pl.BlockSpec((None, None, S, Dh), lambda b, h, kv: (b, h, 0, 0))

    return pl.pallas_call(
        kernel,
        out_shape=jax.ShapeDtypeStruct((B, NH, S, Dh), jnp.bfloat16),
        grid_spec=pltpu.PrefetchScalarGridSpec(
            num_scalar_prefetch=0,
            grid=(B, NH, nkv),
            in_specs=[q_spec, k_spec, v_spec, m_spec],
            out_specs=o_spec,
            scratch_shapes=[pltpu.VMEM((S, 1), jnp.float32),     # running max
                            pltpu.VMEM((S, 1), jnp.float32),     # running denom
                            pltpu.VMEM((S, Dh), jnp.float32)]),  # output acc
        compiler_params=pltpu.CompilerParams(
            dimension_semantics=("parallel", "parallel", "arbitrary"),
            vmem_limit_bytes=_VMEM_LIMIT),
    )(qkv_h, qkv_h, qkv_h, add_mask.astype(jnp.float32))


# -------------------- fused pooler (tanh) + classifier head ------------------

def _head_kernel(cls_ref, wp_ref, bp_ref, wf_ref, bf_ref, o_ref):
    pooled = jnp.tanh(
        jnp.dot(cls_ref[...].astype(jnp.float32), wp_ref[...],
                preferred_element_type=jnp.float32) + bp_ref[...])
    # dropout(p=0.1) is identity at inference.
    o_ref[...] = (jnp.dot(pooled, wf_ref[...],
                          preferred_element_type=jnp.float32) + bf_ref[...])


def pallas_pooler_classifier(cls, pool_w, pool_b, fc_w, fc_b):
    """logits = (tanh(cls @ Wp + bp)) @ Wf + bf — one tiny fused kernel."""
    R, H = cls.shape
    C = fc_w.shape[1]
    return pl.pallas_call(
        _head_kernel,
        out_shape=jax.ShapeDtypeStruct((R, C), jnp.float32),
        grid_spec=pltpu.PrefetchScalarGridSpec(
            num_scalar_prefetch=0,
            grid=(1,),
            in_specs=[pl.BlockSpec((R, H), lambda i: (0, 0)),
                      pl.BlockSpec((H, H), lambda i: (0, 0)),
                      pl.BlockSpec((1, H), lambda i: (0, 0)),
                      pl.BlockSpec((H, C), lambda i: (0, 0)),
                      pl.BlockSpec((1, C), lambda i: (0, 0))],
            out_specs=pl.BlockSpec((R, C), lambda i: (0, 0))),
        compiler_params=pltpu.CompilerParams(
            dimension_semantics=("arbitrary",)),
    )(cls, pool_w.astype(jnp.float32),
      pool_b.reshape(1, H).astype(jnp.float32),
      fc_w.astype(jnp.float32),
      fc_b.reshape(1, C).astype(jnp.float32))


# ------------------------------ model assembly ------------------------------

def init_params(key, *, vocab_size, max_pos, hidden, num_heads, num_layers,
                intermediate, num_classes):
    std = 0.02
    keys = iter(jax.random.split(key, 8 + num_layers * 8))

    def dense(k, shape):
        return jax.random.normal(k, shape, jnp.float32) * std

    params = {
        "word_emb": dense(next(keys), (vocab_size, hidden)),
        "pos_emb": dense(next(keys), (max_pos, hidden)),
        "type_emb": dense(next(keys), (2, hidden)),
        "emb_ln_g": jnp.ones((hidden,), jnp.float32),
        "emb_ln_b": jnp.zeros((hidden,), jnp.float32),
        "layers": [],
        "pool_w": dense(next(keys), (hidden, hidden)),
        "pool_b": jnp.zeros((hidden,), jnp.float32),
        "fc_w": dense(next(keys), (hidden, num_classes)),
        "fc_b": jnp.zeros((num_classes,), jnp.float32),
    }
    for _ in range(num_layers):
        layer = {
            # fused Q|K|V projection: (H, 3H) weight whose output columns are
            # interpreted head-major as (num_heads, {q,k,v}, Dh).
            "w_qkv": dense(next(keys), (hidden, 3 * hidden)),
            "b_qkv": jnp.zeros((3 * hidden,), jnp.float32),
            "wo": dense(next(keys), (hidden, hidden)),
            "bo": jnp.zeros((hidden,), jnp.float32),
            "attn_ln_g": jnp.ones((hidden,), jnp.float32),
            "attn_ln_b": jnp.zeros((hidden,), jnp.float32),
            "w_ffn1": dense(next(keys), (hidden, intermediate)),
            "b_ffn1": jnp.zeros((intermediate,), jnp.float32),
            "w_ffn2": dense(next(keys), (intermediate, hidden)),
            "b_ffn2": jnp.zeros((hidden,), jnp.float32),
            "out_ln_g": jnp.ones((hidden,), jnp.float32),
            "out_ln_b": jnp.zeros((hidden,), jnp.float32),
        }
        params["layers"].append(layer)
    return params


def prepare_params(params):
    """Cast matmul weights to bf16 ONCE, outside the jitted forward path."""
    p = dict(params)
    p["layers"] = []
    for layer in params["layers"]:
        l = dict(layer)
        for name in ("w_qkv", "wo", "w_ffn1", "w_ffn2"):
            l[name] = layer[name].astype(jnp.bfloat16)
        p["layers"].append(l)
    return p


@functools.partial(jax.jit, static_argnames=("num_heads",))
def bert_classifier_forward(params, input_ids, attention_mask, *, num_heads):
    B, S = input_ids.shape
    H = params["word_emb"].shape[1]
    Dh = H // num_heads

    # --- embeddings (gather is XLA glue; LayerNorm runs in a Pallas kernel) ---
    pos_ids = jnp.arange(S, dtype=jnp.int32)
    emb = (jnp.take(params["word_emb"], input_ids, axis=0)
           + jnp.take(params["pos_emb"], pos_ids, axis=0)[None, :, :]
           + params["type_emb"][0][None, None, :])
    x = pallas_layernorm(emb.reshape(B * S, H),
                         params["emb_ln_g"], params["emb_ln_b"])  # (B*S, H) bf16

    # additive attention mask: 0 where attended, -1e4 where masked
    add_mask = ((1.0 - attention_mask.astype(jnp.float32))
                * -10000.0).reshape(B, 1, S)

    for layer in params["layers"]:
        # fused Q/K/V projection (single matmul over (H, 3H))
        qkv = pallas_linear(x, layer["w_qkv"], layer["b_qkv"])     # (B*S, 3H) bf16
        # head-major relayout (one lane-dense XLA transpose per layer):
        # columns are (head, {q,k,v}, Dh) -> (B, NH, 3, S, Dh)
        qkv_h = qkv.reshape(B, S, num_heads, 3, Dh).transpose(0, 2, 3, 1, 4)
        ctx = pallas_attention(qkv_h, add_mask)                    # (B, NH, S, Dh)
        ctx = ctx.transpose(0, 2, 1, 3).reshape(B * S, H)          # merge heads
        # attention output projection fused with residual add + LayerNorm
        x = pallas_linear(ctx, layer["wo"], layer["bo"],
                          residual=x,
                          ln=(layer["attn_ln_g"], layer["attn_ln_b"]))
        # feed-forward: GELU fused in FFN1, add+LayerNorm fused in FFN2
        h = pallas_linear(x, layer["w_ffn1"], layer["b_ffn1"], act="gelu")
        x = pallas_linear(h, layer["w_ffn2"], layer["b_ffn2"],
                          residual=x,
                          ln=(layer["out_ln_g"], layer["out_ln_b"]))

    # --- pooler + classifier: one fused tiny kernel over padded [CLS] rows ---
    cls = x.reshape(B, S, H)[:, 0, :]                               # (B, H)
    pad_rows = ((B + 7) // 8) * 8
    cls_p = jnp.pad(cls, ((0, pad_rows - B), (0, 0)))
    # TODO(synk): training-mode dropout (random Bernoulli mask) not applied.
    logits = pallas_pooler_classifier(cls_p, params["pool_w"], params["pool_b"],
                                      params["fc_w"], params["fc_b"])[:B]
    return logits


# ---------------------------------- main -----------------------------------

if __name__ == "__main__":
    # small synthetic-BERT config
    VOCAB = 100
    MAX_POS = 16
    HIDDEN = 32
    NUM_HEADS = 2
    NUM_LAYERS = 2
    INTERMEDIATE = 64
    NUM_CLASSES = 3
    BATCH = 2
    SEQ = 8

    root = jax.random.PRNGKey(0)
    k_params, k_ids = jax.random.split(root)

    params = init_params(
        k_params, vocab_size=VOCAB, max_pos=MAX_POS, hidden=HIDDEN,
        num_heads=NUM_HEADS, num_layers=NUM_LAYERS,
        intermediate=INTERMEDIATE, num_classes=NUM_CLASSES)
    params = prepare_params(params)   # weights -> bf16 once, outside the jit

    input_ids = jax.random.randint(k_ids, (BATCH, SEQ), 0, VOCAB,
                                   dtype=jnp.int32)
    attention_mask = jnp.array(
        [[1, 1, 1, 1, 1, 1, 1, 1],
         [1, 1, 1, 1, 1, 0, 0, 0]], dtype=jnp.int32)

    logits = bert_classifier_forward(params, input_ids, attention_mask,
                                     num_heads=NUM_HEADS)
    logits = jax.block_until_ready(logits)
    assert logits.shape == (BATCH, NUM_CLASSES)
    assert logits.dtype == jnp.float32
    print("KERNEL_OK")
</pallas_src>

<mosaic_0001>
module attributes {stable_mosaic.version = 11 : i64} {
  func.func @kernel(%arg0: i32, %arg1: i32, %arg2: i32, %arg3: memref<16x32xbf16, #tpu.memory_space<vmem>>, %arg4: memref<32x96xbf16, #tpu.memory_space<vmem>>, %arg5: memref<1x96xf32, #tpu.memory_space<vmem>>, %arg6: memref<16x96xbf16, #tpu.memory_space<vmem>>, %arg7: memref<16x96xf32, #tpu.memory_space<vmem>>) attributes {dimension_semantics = [#tpu.dimension_semantics<parallel>, #tpu.dimension_semantics<parallel>, #tpu.dimension_semantics<arbitrary>], iteration_bounds = array<i64: 1, 1, 1>, scalar_prefetch = 0 : i64, scratch_operands = 1 : i64, tpu.core_type = #tpu.core_type<tc>, window_params = [{transform_indices = @transform_0, window_bounds = array<i64: 16, 32>}, {transform_indices = @transform_1, window_bounds = array<i64: 32, 96>}, {transform_indices = @transform_2, window_bounds = array<i64: 1, 96>}, {transform_indices = @transform_3, window_bounds = array<i64: 16, 96>}]} {
    %c0_i32 = arith.constant 0 : i32
    %0 = arith.cmpi eq, %arg2, %c0_i32 : i32
    %1 = arith.extui %0 : i1 to i32
    %c0_i32_0 = arith.constant 0 : i32
    %2 = arith.cmpi ne, %1, %c0_i32_0 : i32
    scf.if %2 {
      %cst_10 = arith.constant 0.000000e+00 : f32
      %12 = vector.broadcast %cst_10 : f32 to vector<16x96xf32>
      %c0_11 = arith.constant 0 : index
      %c0_12 = arith.constant 0 : index
      %13 = vector.load %arg7[%c0_11, %c0_12] : memref<16x96xf32, #tpu.memory_space<vmem>>, vector<16x96xf32>
      tpu.vector_store %arg7[%c0_11, %c0_12], %12 {strides = array<i32>} : memref<16x96xf32, #tpu.memory_space<vmem>>, vector<16x96xf32>,
    } else {
    }
    %c0 = arith.constant 0 : index
    %c0_1 = arith.constant 0 : index
    %3 = vector.load %arg7[%c0, %c0_1] : memref<16x96xf32, #tpu.memory_space<vmem>>, vector<16x96xf32>
    %c0_2 = arith.constant 0 : index
    %c0_3 = arith.constant 0 : index
    %4 = vector.load %arg3[%c0_2, %c0_3] : memref<16x32xbf16, #tpu.memory_space<vmem>>, vector<16x32xbf16>
    %c0_4 = arith.constant 0 : index
    %c0_5 = arith.constant 0 : index
    %5 = vector.load %arg4[%c0_4, %c0_5] : memref<32x96xbf16, #tpu.memory_space<vmem>>, vector<32x96xbf16>
    %cst = arith.constant dense<0.000000e+00> : vector<16x96xf32>
    %6 = tpu.matmul %4, %5, %cst {dimension_numbers = #tpu.dot_dimension_numbers<[1], [0], [0], [1], [0, 0, 1, 1], [], []>} : vector<16x32xbf16>, vector<32x96xbf16>, vector<16x96xf32> -> vector<16x96xf32>
    %7 = arith.addf %3, %6 : vector<16x96xf32>
    %c0_6 = arith.constant 0 : index
    %c0_7 = arith.constant 0 : index
    %8 = vector.load %arg7[%c0_6, %c0_7] : memref<16x96xf32, #tpu.memory_space<vmem>>, vector<16x96xf32>
    tpu.vector_store %arg7[%c0_6, %c0_7], %7 {strides = array<i32>} : memref<16x96xf32, #tpu.memory_space<vmem>>, vector<16x96xf32>,
    %c0_i32_8 = arith.constant 0 : i32
    %9 = arith.cmpi eq, %arg2, %c0_i32_8 : i32
    %10 = arith.extui %9 : i1 to i32
    %c0_i32_9 = arith.constant 0 : i32
    %11 = arith.cmpi ne, %10, %c0_i32_9 : i32
    scf.if %11 {
      %c0_10 = arith.constant 0 : index
      %c0_11 = arith.constant 0 : index
      %12 = vector.load %arg7[%c0_10, %c0_11] : memref<16x96xf32, #tpu.memory_space<vmem>>, vector<16x96xf32>
      %c0_12 = arith.constant 0 : index
      %c0_13 = arith.constant 0 : index
      %13 = vector.load %arg5[%c0_12, %c0_13] : memref<1x96xf32, #tpu.memory_space<vmem>>, vector<1x96xf32>
      %14 = vector.broadcast %13 : vector<1x96xf32> to vector<16x96xf32>
      %15 = arith.addf %12, %14 : vector<16x96xf32>
      %16 = arith.truncf %15 : vector<16x96xf32> to vector<16x96xbf16>
      %c0_14 = arith.constant 0 : index
      %c0_15 = arith.constant 0 : index
      %17 = vector.load %arg6[%c0_14, %c0_15] : memref<16x96xbf16, #tpu.memory_space<vmem>>, vector<16x96xbf16>
      tpu.vector_store %arg6[%c0_14, %c0_15], %16 {strides = array<i32>} : memref<16x96xbf16, #tpu.memory_space<vmem>>, vector<16x96xbf16>,
    } else {
    }
    return
  }
  func.func @transform_0(%arg0: i32, %arg1: i32, %arg2: i32) -> (i32, i32) {
    %c0_i32 = arith.constant 0 : i32
    return %arg0, %arg2 : i32, i32
  }
  func.func @transform_1(%arg0: i32, %arg1: i32, %arg2: i32) -> (i32, i32) {
    %c0_i32 = arith.constant 0 : i32
    return %arg2, %arg1 : i32, i32
  }
  func.func @transform_2(%arg0: i32, %arg1: i32, %arg2: i32) -> (i32, i32) {
    %c0_i32 = arith.constant 0 : i32
    %c0_i32_0 = arith.constant 0 : i32
    return %c0_i32, %arg1 : i32, i32
  }
  func.func @transform_3(%arg0: i32, %arg1: i32, %arg2: i32) -> (i32, i32) {
    %c0_i32 = arith.constant 0 : i32
    return %arg0, %arg1 : i32, i32
  }
}

module attributes {stable_mosaic.version = 11 : i64} {
  func.func @_ln_kernel(%arg0: i32, %arg1: memref<16x32xf32, #tpu.memory_space<vmem>>, %arg2: memref<1x32xf32, #tpu.memory_space<vmem>>, %arg3: memref<1x32xf32, #tpu.memory_space<vmem>>, %arg4: memref<16x32xbf16, #tpu.memory_space<vmem>>) attributes {dimension_semantics = [#tpu.dimension_semantics<parallel>], iteration_bounds = array<i64: 1>, scalar_prefetch = 0 : i64, scratch_operands = 0 : i64, tpu.core_type = #tpu.core_type<tc>, window_params = [{transform_indices = @transform_0, window_bounds = array<i64: 16, 32>}, {pipeline_mode = #tpu.pipeline_mode<synchronous>, transform_indices = @transform_1, window_bounds = array<i64: 1, 32>}, {pipeline_mode = #tpu.pipeline_mode<synchronous>, transform_indices = @transform_2, window_bounds = array<i64: 1, 32>}, {transform_indices = @transform_3, window_bounds = array<i64: 16, 32>}]} {
    %c0 = arith.constant 0 : index
    %c0_0 = arith.constant 0 : index
    %0 = vector.load %arg1[%c0, %c0_0] : memref<16x32xf32, #tpu.memory_space<vmem>>, vector<16x32xf32>
    %cst = arith.constant dense<0.000000e+00> : vector<16xf32>
    %1 = vector.multi_reduction <add>, %0, %cst [1] : vector<16x32xf32> to vector<16xf32>
    %2 = vector.shape_cast %1 : vector<16xf32> to vector<16x1xf32>
    %cst_1 = arith.constant 3.200000e+01 : f32
    %3 = vector.broadcast %cst_1 : f32 to vector<16x1xf32>
    %4 = arith.divf %2, %3 : vector<16x1xf32>
    %5 = vector.broadcast %4 : vector<16x1xf32> to vector<16x32xf32>
    %6 = arith.subf %0, %5 : vector<16x32xf32>
    %7 = arith.mulf %6, %6 : vector<16x32xf32>
    %cst_2 = arith.constant dense<0.000000e+00> : vector<16xf32>
    %8 = vector.multi_reduction <add>, %7, %cst_2 [1] : vector<16x32xf32> to vector<16xf32>
    %9 = vector.shape_cast %8 : vector<16xf32> to vector<16x1xf32>
    %cst_3 = arith.constant 3.200000e+01 : f32
    %10 = vector.broadcast %cst_3 : f32 to vector<16x1xf32>
    %11 = arith.divf %9, %10 : vector<16x1xf32>
    %cst_4 = arith.constant 9.99999996E-13 : f32
    %12 = vector.broadcast %cst_4 : f32 to vector<16x1xf32>
    %13 = arith.addf %11, %12 : vector<16x1xf32>
    %14 = math.rsqrt %13 : vector<16x1xf32>
    %15 = vector.broadcast %4 : vector<16x1xf32> to vector<16x32xf32>
    %16 = arith.subf %0, %15 : vector<16x32xf32>
    %17 = vector.broadcast %14 : vector<16x1xf32> to vector<16x32xf32>
    %18 = arith.mulf %16, %17 : vector<16x32xf32>
    %c0_5 = arith.constant 0 : index
    %c0_6 = arith.constant 0 : index
    %19 = vector.load %arg2[%c0_5, %c0_6] : memref<1x32xf32, #tpu.memory_space<vmem>>, vector<1x32xf32>
    %20 = vector.broadcast %19 : vector<1x32xf32> to vector<16x32xf32>
    %21 = arith.mulf %18, %20 : vector<16x32xf32>
    %c0_7 = arith.constant 0 : index
    %c0_8 = arith.constant 0 : index
    %22 = vector.load %arg3[%c0_7, %c0_8] : memref<1x32xf32, #tpu.memory_space<vmem>>, vector<1x32xf32>
    %23 = vector.broadcast %22 : vector<1x32xf32> to vector<16x32xf32>
    %24 = arith.addf %21, %23 : vector<16x32xf32>
    %25 = arith.truncf %24 : vector<16x32xf32> to vector<16x32xbf16>
    %c0_9 = arith.constant 0 : index
    %c0_10 = arith.constant 0 : index
    %26 = vector.load %arg4[%c0_9, %c0_10] : memref<16x32xbf16, #tpu.memory_space<vmem>>, vector<16x32xbf16>
    tpu.vector_store %arg4[%c0_9, %c0_10], %25 {strides = array<i32>} : memref<16x32xbf16, #tpu.memory_space<vmem>>, vector<16x32xbf16>,
    return
  }
  func.func @transform_0(%arg0: i32) -> (i32, i32) {
    %c0_i32 = arith.constant 0 : i32
    %c0_i32_0 = arith.constant 0 : i32
    return %arg0, %c0_i32 : i32, i32
  }
  func.func @transform_1(%arg0: i32) -> (i32, i32) {
    %c0_i32 = arith.constant 0 : i32
    %c0_i32_0 = arith.constant 0 : i32
    %c0_i32_1 = arith.constant 0 : i32
    return %c0_i32, %c0_i32_0 : i32, i32
  }
  func.func @transform_2(%arg0: i32) -> (i32, i32) {
    %c0_i32 = arith.constant 0 : i32
    %c0_i32_0 = arith.constant 0 : i32
    %c0_i32_1 = arith.constant 0 : i32
    return %c0_i32, %c0_i32_0 : i32, i32
  }
  func.func @transform_3(%arg0: i32) -> (i32, i32) {
    %c0_i32 = arith.constant 0 : i32
    %c0_i32_0 = arith.constant 0 : i32
    return %arg0, %c0_i32 : i32, i32
  }
}

module attributes {stable_mosaic.version = 11 : i64} {
  func.func @_attn_kernel(%arg0: i32, %arg1: i32, %arg2: i32, %arg3: memref<1x1x1x8x16xbf16, #tpu.memory_space<vmem>>, %arg4: memref<1x1x1x8x16xbf16, #tpu.memory_space<vmem>>, %arg5: memref<1x1x1x8x16xbf16, #tpu.memory_space<vmem>>, %arg6: memref<1x1x8xf32, #tpu.memory_space<vmem>>, %arg7: memref<1x1x8x16xbf16, #tpu.memory_space<vmem>>, %arg8: memref<8x1xf32, #tpu.memory_space<vmem>>, %arg9: memref<8x1xf32, #tpu.memory_space<vmem>>, %arg10: memref<8x16xf32, #tpu.memory_space<vmem>>) attributes {dimension_semantics = [#tpu.dimension_semantics<parallel>, #tpu.dimension_semantics<parallel>, #tpu.dimension_semantics<arbitrary>], iteration_bounds = array<i64: 2, 2, 1>, scalar_prefetch = 0 : i64, scratch_operands = 3 : i64, tpu.core_type = #tpu.core_type<tc>, window_params = [{transform_indices = @transform_0, window_bounds = array<i64: 1, 1, 1, 8, 16>}, {transform_indices = @transform_1, window_bounds = array<i64: 1, 1, 1, 8, 16>}, {transform_indices = @transform_2, window_bounds = array<i64: 1, 1, 1, 8, 16>}, {transform_indices = @transform_3, window_bounds = array<i64: 1, 1, 8>}, {transform_indices = @transform_4, window_bounds = array<i64: 1, 1, 8, 16>}]} {
    %c0_i32 = arith.constant 0 : i32
    %0 = arith.cmpi eq, %arg2, %c0_i32 : i32
    %1 = arith.extui %0 : i1 to i32
    %c0_i32_0 = arith.constant 0 : i32
    %2 = arith.cmpi ne, %1, %c0_i32_0 : i32
    scf.if %2 {
      %cst_38 = arith.constant 0xFF800000 : f32
      %43 = vector.broadcast %cst_38 : f32 to vector<8x1xf32>
      %c0_39 = arith.constant 0 : index
      %c0_40 = arith.constant 0 : index
      %44 = vector.load %arg8[%c0_39, %c0_40] : memref<8x1xf32, #tpu.memory_space<vmem>>, vector<8x1xf32>
      tpu.vector_store %arg8[%c0_39, %c0_40], %43 {strides = array<i32>} : memref<8x1xf32, #tpu.memory_space<vmem>>, vector<8x1xf32>,
      %cst_41 = arith.constant 0.000000e+00 : f32
      %45 = vector.broadcast %cst_41 : f32 to vector<8x1xf32>
      %c0_42 = arith.constant 0 : index
      %c0_43 = arith.constant 0 : index
      %46 = vector.load %arg9[%c0_42, %c0_43] : memref<8x1xf32, #tpu.memory_space<vmem>>, vector<8x1xf32>
      tpu.vector_store %arg9[%c0_42, %c0_43], %45 {strides = array<i32>} : memref<8x1xf32, #tpu.memory_space<vmem>>, vector<8x1xf32>,
      %cst_44 = arith.constant 0.000000e+00 : f32
      %47 = vector.broadcast %cst_44 : f32 to vector<8x16xf32>
      %c0_45 = arith.constant 0 : index
      %c0_46 = arith.constant 0 : index
      %48 = vector.load %arg10[%c0_45, %c0_46] : memref<8x16xf32, #tpu.memory_space<vmem>>, vector<8x16xf32>
      tpu.vector_store %arg10[%c0_45, %c0_46], %47 {strides = array<i32>} : memref<8x16xf32, #tpu.memory_space<vmem>>, vector<8x16xf32>,
    } else {
    }
    %c0 = arith.constant 0 : index
    %c0_1 = arith.constant 0 : index
    %c0_2 = arith.constant 0 : index
    %c0_3 = arith.constant 0 : index
    %c0_4 = arith.constant 0 : index
    %3 = vector.load %arg3[%c0, %c0_1, %c0_2, %c0_3, %c0_4] : memref<1x1x1x8x16xbf16, #tpu.memory_space<vmem>>, vector<1x1x1x8x16xbf16>
    %4 = vector.shape_cast %3 : vector<1x1x1x8x16xbf16> to vector<8x16xbf16>
    %c0_5 = arith.constant 0 : index
    %c0_6 = arith.constant 0 : index
    %c0_7 = arith.constant 0 : index
    %c0_8 = arith.constant 0 : index
    %c0_9 = arith.constant 0 : index
    %5 = vector.load %arg4[%c0_5, %c0_6, %c0_7, %c0_8, %c0_9] : memref<1x1x1x8x16xbf16, #tpu.memory_space<vmem>>, vector<1x1x1x8x16xbf16>
    %6 = vector.shape_cast %5 : vector<1x1x1x8x16xbf16> to vector<8x16xbf16>
    %cst = arith.constant dense<0.000000e+00> : vector<8x8xf32>
    %7 = tpu.matmul %4, %6, %cst {dimension_numbers = #tpu.dot_dimension_numbers<[1], [1], [0], [0], [0, 0, 1, 0], [], []>} : vector<8x16xbf16>, vector<8x16xbf16>, vector<8x8xf32> -> vector<8x8xf32>
    %cst_10 = arith.constant 2.500000e-01 : f32
    %8 = vector.broadcast %cst_10 : f32 to vector<8x8xf32>
    %9 = arith.mulf %7, %8 : vector<8x8xf32>
    %c0_11 = arith.constant 0 : index
    %c0_12 = arith.constant 0 : index
    %c0_13 = arith.constant 0 : index
    %10 = vector.load %arg6[%c0_11, %c0_12, %c0_13] : memref<1x1x8xf32, #tpu.memory_space<vmem>>, vector<1x1x8xf32>
    %11 = vector.shape_cast %10 : vector<1x1x8xf32> to vector<1x8xf32>
    %12 = vector.broadcast %11 : vector<1x8xf32> to vector<8x8xf32>
    %13 = arith.addf %9, %12 : vector<8x8xf32>
    %c0_14 = arith.constant 0 : index
    %c0_15 = arith.constant 0 : index
    %14 = vector.load %arg8[%c0_14, %c0_15] : memref<8x1xf32, #tpu.memory_space<vmem>>, vector<8x1xf32>
    %cst_16 = arith.constant dense<0xFF800000> : vector<8xf32>
    %15 = vector.multi_reduction <maximumf>, %13, %cst_16 [1] : vector<8x8xf32> to vector<8xf32>
    %16 = vector.shape_cast %15 : vector<8xf32> to vector<8x1xf32>
    %17 = arith.maximumf %14, %16 : vector<8x1xf32>
    %c0_17 = arith.constant 0 : index
    %c0_18 = arith.constant 0 : index
    %18 = vector.load %arg8[%c0_17, %c0_18] : memref<8x1xf32, #tpu.memory_space<vmem>>, vector<8x1xf32>
    %19 = arith.subf %18, %17 : vector<8x1xf32>
    %20 = math.exp %19 : vector<8x1xf32>
    %21 = vector.broadcast %17 : vector<8x1xf32> to vector<8x8xf32>
    %22 = arith.subf %13, %21 : vector<8x8xf32>
    %23 = math.exp %22 : vector<8x8xf32>
    %c0_19 = arith.constant 0 : index
    %c0_20 = arith.constant 0 : index
    %24 = vector.load %arg9[%c0_19, %c0_20] : memref<8x1xf32, #tpu.memory_space<vmem>>, vector<8x1xf32>
    %25 = arith.mulf %20, %24 : vector<8x1xf32>
    %cst_21 = arith.constant dense<0.000000e+00> : vector<8xf32>
    %26 = vector.multi_reduction <add>, %23, %cst_21 [1] : vector<8x8xf32> to vector<8xf32>
    %27 = vector.shape_cast %26 : vector<8xf32> to vector<8x1xf32>
    %28 = arith.addf %25, %27 : vector<8x1xf32>
    %c0_22 = arith.constant 0 : index
    %c0_23 = arith.constant 0 : index
    %29 = vector.load %arg9[%c0_22, %c0_23] : memref<8x1xf32, #tpu.memory_space<vmem>>, vector<8x1xf32>
    tpu.vector_store %arg9[%c0_22, %c0_23], %28 {strides = array<i32>} : memref<8x1xf32, #tpu.memory_space<vmem>>, vector<8x1xf32>,
    %c0_24 = arith.constant 0 : index
    %c0_25 = arith.constant 0 : index
    %30 = vector.load %arg10[%c0_24, %c0_25] : memref<8x16xf32, #tpu.memory_space<vmem>>, vector<8x16xf32>
    %31 = vector.broadcast %20 : vector<8x1xf32> to vector<8x16xf32>
    %32 = arith.mulf %31, %30 : vector<8x16xf32>
    %33 = arith.truncf %23 : vector<8x8xf32> to vector<8x8xbf16>
    %c0_26 = arith.constant 0 : index
    %c0_27 = arith.constant 0 : index
    %c0_28 = arith.constant 0 : index
    %c0_29 = arith.constant 0 : index
    %c0_30 = arith.constant 0 : index
    %34 = vector.load %arg5[%c0_26, %c0_27, %c0_28, %c0_29, %c0_30] : memref<1x1x1x8x16xbf16, #tpu.memory_space<vmem>>, vector<1x1x1x8x16xbf16>
    %35 = vector.shape_cast %34 : vector<1x1x1x8x16xbf16> to vector<8x16xbf16>
    %cst_31 = arith.constant dense<0.000000e+00> : vector<8x16xf32>
    %36 = tpu.matmul %33, %35, %cst_31 {dimension_numbers = #tpu.dot_dimension_numbers<[1], [0], [0], [1], [0, 0, 1, 1], [], []>} : vector<8x8xbf16>, vector<8x16xbf16>, vector<8x16xf32> -> vector<8x16xf32>
    %37 = arith.addf %32, %36 : vector<8x16xf32>
    %c0_32 = arith.constant 0 : index
    %c0_33 = arith.constant 0 : index
    %38 = vector.load %arg10[%c0_32, %c0_33] : memref<8x16xf32, #tpu.memory_space<vmem>>, vector<8x16xf32>
    tpu.vector_store %arg10[%c0_32, %c0_33], %37 {strides = array<i32>} : memref<8x16xf32, #tpu.memory_space<vmem>>, vector<8x16xf32>,
    %c0_34 = arith.constant 0 : index
    %c0_35 = arith.constant 0 : index
    %39 = vector.load %arg8[%c0_34, %c0_35] : memref<8x1xf32, #tpu.memory_space<vmem>>, vector<8x1xf32>
    tpu.vector_store %arg8[%c0_34, %c0_35], %17 {strides = array<i32>} : memref<8x1xf32, #tpu.memory_space<vmem>>, vector<8x1xf32>,
    %c0_i32_36 = arith.constant 0 : i32
    %40 = arith.cmpi eq, %arg2, %c0_i32_36 : i32
    %41 = arith.extui %40 : i1 to i32
    %c0_i32_37 = arith.constant 0 : i32
    %42 = arith.cmpi ne, %41, %c0_i32_37 : i32
    scf.if %42 {
      %c0_38 = arith.constant 0 : index
      %c0_39 = arith.constant 0 : index
      %43 = vector.load %arg10[%c0_38, %c0_39] : memref<8x16xf32, #tpu.memory_space<vmem>>, vector<8x16xf32>
      %c0_40 = arith.constant 0 : index
      %c0_41 = arith.constant 0 : index
      %44 = vector.load %arg9[%c0_40, %c0_41] : memref<8x1xf32, #tpu.memory_space<vmem>>, vector<8x1xf32>
      %45 = tpu.reciprocal %44 {approx = true} : vector<8x1xf32> -> vector<8x1xf32>
      %46 = vector.broadcast %45 : vector<8x1xf32> to vector<8x16xf32>
      %47 = arith.mulf %43, %46 : vector<8x16xf32>
      %48 = arith.truncf %47 : vector<8x16xf32> to vector<8x16xbf16>
      %c0_42 = arith.constant 0 : index
      %c0_43 = arith.constant 0 : index
      %c0_44 = arith.constant 0 : index
      %c0_45 = arith.constant 0 : index
      %49 = vector.load %arg7[%c0_42, %c0_43, %c0_44, %c0_45] : memref<1x1x8x16xbf16, #tpu.memory_space<vmem>>, vector<1x1x8x16xbf16>
      %50 = vector.shape_cast %49 : vector<1x1x8x16xbf16> to vector<8x16xbf16>
      %51 = vector.shape_cast %48 : vector<8x16xbf16> to vector<1x1x8x16xbf16>
      tpu.vector_store %arg7[%c0_42, %c0_43, %c0_44, %c0_45], %51 {strides = array<i32>} : memref<1x1x8x16xbf16, #tpu.memory_space<vmem>>, vector<1x1x8x16xbf16>,
    } else {
    }
    return
  }
  func.func @transform_0(%arg0: i32, %arg1: i32, %arg2: i32) -> (i32, i32, i32, i32, i32) {
    %c0_i32 = arith.constant 0 : i32
    %c0_i32_0 = arith.constant 0 : i32
    %c0_i32_1 = arith.constant 0 : i32
    %c0_i32_2 = arith.constant 0 : i32
    return %arg0, %arg1, %c0_i32, %c0_i32_0, %c0_i32_1 : i32, i32, i32, i32, i32
  }
  func.func @transform_1(%arg0: i32, %arg1: i32, %arg2: i32) -> (i32, i32, i32, i32, i32) {
    %c1_i32 = arith.constant 1 : i32
    %c0_i32 = arith.constant 0 : i32
    %c0_i32_0 = arith.constant 0 : i32
    return %arg0, %arg1, %c1_i32, %arg2, %c0_i32 : i32, i32, i32, i32, i32
  }
  func.func @transform_2(%arg0: i32, %arg1: i32, %arg2: i32) -> (i32, i32, i32, i32, i32) {
    %c2_i32 = arith.constant 2 : i32
    %c0_i32 = arith.constant 0 : i32
    %c0_i32_0 = arith.constant 0 : i32
    return %arg0, %arg1, %c2_i32, %arg2, %c0_i32 : i32, i32, i32, i32, i32
  }
  func.func @transform_3(%arg0: i32, %arg1: i32, %arg2: i32) -> (i32, i32, i32) {
    %c0_i32 = arith.constant 0 : i32
    %c0_i32_0 = arith.constant 0 : i32
    return %arg0, %c0_i32, %arg2 : i32, i32, i32
  }
  func.func @transform_4(%arg0: i32, %arg1: i32, %arg2: i32) -> (i32, i32, i32, i32) {
    %c0_i32 = arith.constant 0 : i32
    %c0_i32_0 = arith.constant 0 : i32
    %c0_i32_1 = arith.constant 0 : i32
    return %arg0, %arg1, %c0_i32, %c0_i32_0 : i32, i32, i32, i32
  }
}

module attributes {stable_mosaic.version = 11 : i64} {
  func.func @_mm_add_ln_kernel(%arg0: i32, %arg1: i32, %arg2: i32, %arg3: memref<16x32xbf16, #tpu.memory_space<vmem>>, %arg4: memref<32x32xbf16, #tpu.memory_space<vmem>>, %arg5: memref<1x32xf32, #tpu.memory_space<vmem>>, %arg6: memref<16x32xbf16, #tpu.memory_space<vmem>>, %arg7: memref<1x32xf32, #tpu.memory_space<vmem>>, %arg8: memref<1x32xf32, #tpu.memory_space<vmem>>, %arg9: memref<16x32xbf16, #tpu.memory_space<vmem>>, %arg10: memref<16x32xf32, #tpu.memory_space<vmem>>) attributes {dimension_semantics = [#tpu.dimension_semantics<parallel>, #tpu.dimension_semantics<parallel>, #tpu.dimension_semantics<arbitrary>], iteration_bounds = array<i64: 1, 1, 1>, scalar_prefetch = 0 : i64, scratch_operands = 1 : i64, tpu.core_type = #tpu.core_type<tc>, window_params = [{transform_indices = @transform_0, window_bounds = array<i64: 16, 32>}, {transform_indices = @transform_1, window_bounds = array<i64: 32, 32>}, {transform_indices = @transform_2, window_bounds = array<i64: 1, 32>}, {transform_indices = @transform_3, window_bounds = array<i64: 16, 32>}, {transform_indices = @transform_4, window_bounds = array<i64: 1, 32>}, {transform_indices = @transform_5, window_bounds = array<i64: 1, 32>}, {transform_indices = @transform_6, window_bounds = array<i64: 16, 32>}]} {
    %c0_i32 = arith.constant 0 : i32
    %0 = arith.cmpi eq, %arg2, %c0_i32 : i32
    %1 = arith.extui %0 : i1 to i32
    %c0_i32_0 = arith.constant 0 : i32
    %2 = arith.cmpi ne, %1, %c0_i32_0 : i32
    scf.if %2 {
      %cst_10 = arith.constant 0.000000e+00 : f32
      %12 = vector.broadcast %cst_10 : f32 to vector<16x32xf32>
      %c0_11 = arith.constant 0 : index
      %c0_12 = arith.constant 0 : index
      %13 = vector.load %arg10[%c0_11, %c0_12] : memref<16x32xf32, #tpu.memory_space<vmem>>, vector<16x32xf32>
      tpu.vector_store %arg10[%c0_11, %c0_12], %12 {strides = array<i32>} : memref<16x32xf32, #tpu.memory_space<vmem>>, vector<16x32xf32>,
    } else {
    }
    %c0 = arith.constant 0 : index
    %c0_1 = arith.constant 0 : index
    %3 = vector.load %arg10[%c0, %c0_1] : memref<16x32xf32, #tpu.memory_space<vmem>>, vector<16x32xf32>
    %c0_2 = arith.constant 0 : index
    %c0_3 = arith.constant 0 : index
    %4 = vector.load %arg3[%c0_2, %c0_3] : memref<16x32xbf16, #tpu.memory_space<vmem>>, vector<16x32xbf16>
    %c0_4 = arith.constant 0 : index
    %c0_5 = arith.constant 0 : index
    %5 = vector.load %arg4[%c0_4, %c0_5] : memref<32x32xbf16, #tpu.memory_space<vmem>>, vector<32x32xbf16>
    %cst = arith.constant dense<0.000000e+00> : vector<16x32xf32>
    %6 = tpu.matmul %4, %5, %cst {dimension_numbers = #tpu.dot_dimension_numbers<[1], [0], [0], [1], [0, 0, 1, 1], [], []>} : vector<16x32xbf16>, vector<32x32xbf16>, vector<16x32xf32> -> vector<16x32xf32>
    %7 = arith.addf %3, %6 : vector<16x32xf32>
    %c0_6 = arith.constant 0 : index
    %c0_7 = arith.constant 0 : index
    %8 = vector.load %arg10[%c0_6, %c0_7] : memref<16x32xf32, #tpu.memory_space<vmem>>, vector<16x32xf32>
    tpu.vector_store %arg10[%c0_6, %c0_7], %7 {strides = array<i32>} : memref<16x32xf32, #tpu.memory_space<vmem>>, vector<16x32xf32>,
    %c0_i32_8 = arith.constant 0 : i32
    %9 = arith.cmpi eq, %arg2, %c0_i32_8 : i32
    %10 = arith.extui %9 : i1 to i32
    %c0_i32_9 = arith.constant 0 : i32
    %11 = arith.cmpi ne, %10, %c0_i32_9 : i32
    scf.if %11 {
      %c0_10 = arith.constant 0 : index
      %c0_11 = arith.constant 0 : index
      %12 = vector.load %arg10[%c0_10, %c0_11] : memref<16x32xf32, #tpu.memory_space<vmem>>, vector<16x32xf32>
      %c0_12 = arith.constant 0 : index
      %c0_13 = arith.constant 0 : index
      %13 = vector.load %arg5[%c0_12, %c0_13] : memref<1x32xf32, #tpu.memory_space<vmem>>, vector<1x32xf32>
      %14 = vector.broadcast %13 : vector<1x32xf32> to vector<16x32xf32>
      %15 = arith.addf %12, %14 : vector<16x32xf32>
      %c0_14 = arith.constant 0 : index
      %c0_15 = arith.constant 0 : index
      %16 = vector.load %arg6[%c0_14, %c0_15] : memref<16x32xbf16, #tpu.memory_space<vmem>>, vector<16x32xbf16>
      %17 = arith.extf %16 : vector<16x32xbf16> to vector<16x32xf32>
      %18 = arith.addf %15, %17 : vector<16x32xf32>
      %cst_16 = arith.constant dense<0.000000e+00> : vector<16xf32>
      %19 = vector.multi_reduction <add>, %18, %cst_16 [1] : vector<16x32xf32> to vector<16xf32>
      %20 = vector.shape_cast %19 : vector<16xf32> to vector<16x1xf32>
      %cst_17 = arith.constant 3.200000e+01 : f32
      %21 = vector.broadcast %cst_17 : f32 to vector<16x1xf32>
      %22 = arith.divf %20, %21 : vector<16x1xf32>
      %23 = vector.broadcast %22 : vector<16x1xf32> to vector<16x32xf32>
      %24 = arith.subf %18, %23 : vector<16x32xf32>
      %25 = arith.mulf %24, %24 : vector<16x32xf32>
      %cst_18 = arith.constant dense<0.000000e+00> : vector<16xf32>
      %26 = vector.multi_reduction <add>, %25, %cst_18 [1] : vector<16x32xf32> to vector<16xf32>
      %27 = vector.shape_cast %26 : vector<16xf32> to vector<16x1xf32>
      %cst_19 = arith.constant 3.200000e+01 : f32
      %28 = vector.broadcast %cst_19 : f32 to vector<16x1xf32>
      %29 = arith.divf %27, %28 : vector<16x1xf32>
      %cst_20 = arith.constant 9.99999996E-13 : f32
      %30 = vector.broadcast %cst_20 : f32 to vector<16x1xf32>
      %31 = arith.addf %29, %30 : vector<16x1xf32>
      %32 = math.rsqrt %31 : vector<16x1xf32>
      %33 = vector.broadcast %22 : vector<16x1xf32> to vector<16x32xf32>
      %34 = arith.subf %18, %33 : vector<16x32xf32>
      %35 = vector.broadcast %32 : vector<16x1xf32> to vector<16x32xf32>
      %36 = arith.mulf %34, %35 : vector<16x32xf32>
      %c0_21 = arith.constant 0 : index
      %c0_22 = arith.constant 0 : index
      %37 = vector.load %arg7[%c0_21, %c0_22] : memref<1x32xf32, #tpu.memory_space<vmem>>, vector<1x32xf32>
      %38 = vector.broadcast %37 : vector<1x32xf32> to vector<16x32xf32>
      %39 = arith.mulf %36, %38 : vector<16x32xf32>
      %c0_23 = arith.constant 0 : index
      %c0_24 = arith.constant 0 : index
      %40 = vector.load %arg8[%c0_23, %c0_24] : memref<1x32xf32, #tpu.memory_space<vmem>>, vector<1x32xf32>
      %41 = vector.broadcast %40 : vector<1x32xf32> to vector<16x32xf32>
      %42 = arith.addf %39, %41 : vector<16x32xf32>
      %43 = arith.truncf %42 : vector<16x32xf32> to vector<16x32xbf16>
      %c0_25 = arith.constant 0 : index
      %c0_26 = arith.constant 0 : index
      %44 = vector.load %arg9[%c0_25, %c0_26] : memref<16x32xbf16, #tpu.memory_space<vmem>>, vector<16x32xbf16>
      tpu.vector_store %arg9[%c0_25, %c0_26], %43 {strides = array<i32>} : memref<16x32xbf16, #tpu.memory_space<vmem>>, vector<16x32xbf16>,
    } else {
    }
    return
  }
  func.func @transform_0(%arg0: i32, %arg1: i32, %arg2: i32) -> (i32, i32) {
    %c0_i32 = arith.constant 0 : i32
    return %arg0, %arg2 : i32, i32
  }
  func.func @transform_1(%arg0: i32, %arg1: i32, %arg2: i32) -> (i32, i32) {
    %c0_i32 = arith.constant 0 : i32
    return %arg2, %arg1 : i32, i32
  }
  func.func @transform_2(%arg0: i32, %arg1: i32, %arg2: i32) -> (i32, i32) {
    %c0_i32 = arith.constant 0 : i32
    %c0_i32_0 = arith.constant 0 : i32
    return %c0_i32, %arg1 : i32, i32
  }
  func.func @transform_3(%arg0: i32, %arg1: i32, %arg2: i32) -> (i32, i32) {
    %c0_i32 = arith.constant 0 : i32
    return %arg0, %arg1 : i32, i32
  }
  func.func @transform_4(%arg0: i32, %arg1: i32, %arg2: i32) -> (i32, i32) {
    %c0_i32 = arith.constant 0 : i32
    %c0_i32_0 = arith.constant 0 : i32
    return %c0_i32, %arg1 : i32, i32
  }
  func.func @transform_5(%arg0: i32, %arg1: i32, %arg2: i32) -> (i32, i32) {
    %c0_i32 = arith.constant 0 : i32
    %c0_i32_0 = arith.constant 0 : i32
    return %c0_i32, %arg1 : i32, i32
  }
  func.func @transform_6(%arg0: i32, %arg1: i32, %arg2: i32) -> (i32, i32) {
    %c0_i32 = arith.constant 0 : i32
    return %arg0, %arg1 : i32, i32
  }
}

module attributes {stable_mosaic.version = 11 : i64} {
  func.func @kernel(%arg0: i32, %arg1: i32, %arg2: i32, %arg3: memref<16x32xbf16, #tpu.memory_space<vmem>>, %arg4: memref<32x64xbf16, #tpu.memory_space<vmem>>, %arg5: memref<1x64xf32, #tpu.memory_space<vmem>>, %arg6: memref<16x64xbf16, #tpu.memory_space<vmem>>, %arg7: memref<16x64xf32, #tpu.memory_space<vmem>>) attributes {dimension_semantics = [#tpu.dimension_semantics<parallel>, #tpu.dimension_semantics<parallel>, #tpu.dimension_semantics<arbitrary>], iteration_bounds = array<i64: 1, 1, 1>, scalar_prefetch = 0 : i64, scratch_operands = 1 : i64, tpu.core_type = #tpu.core_type<tc>, window_params = [{transform_indices = @transform_0, window_bounds = array<i64: 16, 32>}, {transform_indices = @transform_1, window_bounds = array<i64: 32, 64>}, {transform_indices = @transform_2, window_bounds = array<i64: 1, 64>}, {transform_indices = @transform_3, window_bounds = array<i64: 16, 64>}]} {
    %c0_i32 = arith.constant 0 : i32
    %0 = arith.cmpi eq, %arg2, %c0_i32 : i32
    %1 = arith.extui %0 : i1 to i32
    %c0_i32_0 = arith.constant 0 : i32
    %2 = arith.cmpi ne, %1, %c0_i32_0 : i32
    scf.if %2 {
      %cst_10 = arith.constant 0.000000e+00 : f32
      %12 = vector.broadcast %cst_10 : f32 to vector<16x64xf32>
      %c0_11 = arith.constant 0 : index
      %c0_12 = arith.constant 0 : index
      %13 = vector.load %arg7[%c0_11, %c0_12] : memref<16x64xf32, #tpu.memory_space<vmem>>, vector<16x64xf32>
      tpu.vector_store %arg7[%c0_11, %c0_12], %12 {strides = array<i32>} : memref<16x64xf32, #tpu.memory_space<vmem>>, vector<16x64xf32>,
    } else {
    }
    %c0 = arith.constant 0 : index
    %c0_1 = arith.constant 0 : index
    %3 = vector.load %arg7[%c0, %c0_1] : memref<16x64xf32, #tpu.memory_space<vmem>>, vector<16x64xf32>
    %c0_2 = arith.constant 0 : index
    %c0_3 = arith.constant 0 : index
    %4 = vector.load %arg3[%c0_2, %c0_3] : memref<16x32xbf16, #tpu.memory_space<vmem>>, vector<16x32xbf16>
    %c0_4 = arith.constant 0 : index
    %c0_5 = arith.constant 0 : index
    %5 = vector.load %arg4[%c0_4, %c0_5] : memref<32x64xbf16, #tpu.memory_space<vmem>>, vector<32x64xbf16>
    %cst = arith.constant dense<0.000000e+00> : vector<16x64xf32>
    %6 = tpu.matmul %4, %5, %cst {dimension_numbers = #tpu.dot_dimension_numbers<[1], [0], [0], [1], [0, 0, 1, 1], [], []>} : vector<16x32xbf16>, vector<32x64xbf16>, vector<16x64xf32> -> vector<16x64xf32>
    %7 = arith.addf %3, %6 : vector<16x64xf32>
    %c0_6 = arith.constant 0 : index
    %c0_7 = arith.constant 0 : index
    %8 = vector.load %arg7[%c0_6, %c0_7] : memref<16x64xf32, #tpu.memory_space<vmem>>, vector<16x64xf32>
    tpu.vector_store %arg7[%c0_6, %c0_7], %7 {strides = array<i32>} : memref<16x64xf32, #tpu.memory_space<vmem>>, vector<16x64xf32>,
    %c0_i32_8 = arith.constant 0 : i32
    %9 = arith.cmpi eq, %arg2, %c0_i32_8 : i32
    %10 = arith.extui %9 : i1 to i32
    %c0_i32_9 = arith.constant 0 : i32
    %11 = arith.cmpi ne, %10, %c0_i32_9 : i32
    scf.if %11 {
      %c0_10 = arith.constant 0 : index
      %c0_11 = arith.constant 0 : index
      %12 = vector.load %arg7[%c0_10, %c0_11] : memref<16x64xf32, #tpu.memory_space<vmem>>, vector<16x64xf32>
      %c0_12 = arith.constant 0 : index
      %c0_13 = arith.constant 0 : index
      %13 = vector.load %arg5[%c0_12, %c0_13] : memref<1x64xf32, #tpu.memory_space<vmem>>, vector<1x64xf32>
      %14 = vector.broadcast %13 : vector<1x64xf32> to vector<16x64xf32>
      %15 = arith.addf %12, %14 : vector<16x64xf32>
      %cst_14 = arith.constant 5.000000e-01 : f32
      %16 = vector.broadcast %cst_14 : f32 to vector<16x64xf32>
      %17 = arith.mulf %16, %15 : vector<16x64xf32>
      %cst_15 = arith.constant 0.707106769 : f32
      %18 = vector.broadcast %cst_15 : f32 to vector<16x64xf32>
      %19 = arith.mulf %15, %18 : vector<16x64xf32>
      %20 = math.erf %19 : vector<16x64xf32>
      %cst_16 = arith.constant 1.000000e+00 : f32
      %21 = vector.broadcast %cst_16 : f32 to vector<16x64xf32>
      %22 = arith.addf %21, %20 : vector<16x64xf32>
      %23 = arith.mulf %17, %22 : vector<16x64xf32>
      %24 = arith.truncf %23 : vector<16x64xf32> to vector<16x64xbf16>
      %c0_17 = arith.constant 0 : index
      %c0_18 = arith.constant 0 : index
      %25 = vector.load %arg6[%c0_17, %c0_18] : memref<16x64xbf16, #tpu.memory_space<vmem>>, vector<16x64xbf16>
      tpu.vector_store %arg6[%c0_17, %c0_18], %24 {strides = array<i32>} : memref<16x64xbf16, #tpu.memory_space<vmem>>, vector<16x64xbf16>,
    } else {
    }
    return
  }
  func.func @transform_0(%arg0: i32, %arg1: i32, %arg2: i32) -> (i32, i32) {
    %c0_i32 = arith.constant 0 : i32
    return %arg0, %arg2 : i32, i32
  }
  func.func @transform_1(%arg0: i32, %arg1: i32, %arg2: i32) -> (i32, i32) {
    %c0_i32 = arith.constant 0 : i32
    return %arg2, %arg1 : i32, i32
  }
  func.func @transform_2(%arg0: i32, %arg1: i32, %arg2: i32) -> (i32, i32) {
    %c0_i32 = arith.constant 0 : i32
    %c0_i32_0 = arith.constant 0 : i32
    return %c0_i32, %arg1 : i32, i32
  }
  func.func @transform_3(%arg0: i32, %arg1: i32, %arg2: i32) -> (i32, i32) {
    %c0_i32 = arith.constant 0 : i32
    return %arg0, %arg1 : i32, i32
  }
}

module attributes {stable_mosaic.version = 11 : i64} {
  func.func @_mm_add_ln_kernel(%arg0: i32, %arg1: i32, %arg2: i32, %arg3: memref<16x64xbf16, #tpu.memory_space<vmem>>, %arg4: memref<64x32xbf16, #tpu.memory_space<vmem>>, %arg5: memref<1x32xf32, #tpu.memory_space<vmem>>, %arg6: memref<16x32xbf16, #tpu.memory_space<vmem>>, %arg7: memref<1x32xf32, #tpu.memory_space<vmem>>, %arg8: memref<1x32xf32, #tpu.memory_space<vmem>>, %arg9: memref<16x32xbf16, #tpu.memory_space<vmem>>, %arg10: memref<16x32xf32, #tpu.memory_space<vmem>>) attributes {dimension_semantics = [#tpu.dimension_semantics<parallel>, #tpu.dimension_semantics<parallel>, #tpu.dimension_semantics<arbitrary>], iteration_bounds = array<i64: 1, 1, 1>, scalar_prefetch = 0 : i64, scratch_operands = 1 : i64, tpu.core_type = #tpu.core_type<tc>, window_params = [{transform_indices = @transform_0, window_bounds = array<i64: 16, 64>}, {transform_indices = @transform_1, window_bounds = array<i64: 64, 32>}, {transform_indices = @transform_2, window_bounds = array<i64: 1, 32>}, {transform_indices = @transform_3, window_bounds = array<i64: 16, 32>}, {transform_indices = @transform_4, window_bounds = array<i64: 1, 32>}, {transform_indices = @transform_5, window_bounds = array<i64: 1, 32>}, {transform_indices = @transform_6, window_bounds = array<i64: 16, 32>}]} {
    %c0_i32 = arith.constant 0 : i32
    %0 = arith.cmpi eq, %arg2, %c0_i32 : i32
    %1 = arith.extui %0 : i1 to i32
    %c0_i32_0 = arith.constant 0 : i32
    %2 = arith.cmpi ne, %1, %c0_i32_0 : i32
    scf.if %2 {
      %cst_10 = arith.constant 0.000000e+00 : f32
      %12 = vector.broadcast %cst_10 : f32 to vector<16x32xf32>
      %c0_11 = arith.constant 0 : index
      %c0_12 = arith.constant 0 : index
      %13 = vector.load %arg10[%c0_11, %c0_12] : memref<16x32xf32, #tpu.memory_space<vmem>>, vector<16x32xf32>
      tpu.vector_store %arg10[%c0_11, %c0_12], %12 {strides = array<i32>} : memref<16x32xf32, #tpu.memory_space<vmem>>, vector<16x32xf32>,
    } else {
    }
    %c0 = arith.constant 0 : index
    %c0_1 = arith.constant 0 : index
    %3 = vector.load %arg10[%c0, %c0_1] : memref<16x32xf32, #tpu.memory_space<vmem>>, vector<16x32xf32>
    %c0_2 = arith.constant 0 : index
    %c0_3 = arith.constant 0 : index
    %4 = vector.load %arg3[%c0_2, %c0_3] : memref<16x64xbf16, #tpu.memory_space<vmem>>, vector<16x64xbf16>
    %c0_4 = arith.constant 0 : index
    %c0_5 = arith.constant 0 : index
    %5 = vector.load %arg4[%c0_4, %c0_5] : memref<64x32xbf16, #tpu.memory_space<vmem>>, vector<64x32xbf16>
    %cst = arith.constant dense<0.000000e+00> : vector<16x32xf32>
    %6 = tpu.matmul %4, %5, %cst {dimension_numbers = #tpu.dot_dimension_numbers<[1], [0], [0], [1], [0, 0, 1, 1], [], []>} : vector<16x64xbf16>, vector<64x32xbf16>, vector<16x32xf32> -> vector<16x32xf32>
    %7 = arith.addf %3, %6 : vector<16x32xf32>
    %c0_6 = arith.constant 0 : index
    %c0_7 = arith.constant 0 : index
    %8 = vector.load %arg10[%c0_6, %c0_7] : memref<16x32xf32, #tpu.memory_space<vmem>>, vector<16x32xf32>
    tpu.vector_store %arg10[%c0_6, %c0_7], %7 {strides = array<i32>} : memref<16x32xf32, #tpu.memory_space<vmem>>, vector<16x32xf32>,
    %c0_i32_8 = arith.constant 0 : i32
    %9 = arith.cmpi eq, %arg2, %c0_i32_8 : i32
    %10 = arith.extui %9 : i1 to i32
    %c0_i32_9 = arith.constant 0 : i32
    %11 = arith.cmpi ne, %10, %c0_i32_9 : i32
    scf.if %11 {
      %c0_10 = arith.constant 0 : index
      %c0_11 = arith.constant 0 : index
      %12 = vector.load %arg10[%c0_10, %c0_11] : memref<16x32xf32, #tpu.memory_space<vmem>>, vector<16x32xf32>
      %c0_12 = arith.constant 0 : index
      %c0_13 = arith.constant 0 : index
      %13 = vector.load %arg5[%c0_12, %c0_13] : memref<1x32xf32, #tpu.memory_space<vmem>>, vector<1x32xf32>
      %14 = vector.broadcast %13 : vector<1x32xf32> to vector<16x32xf32>
      %15 = arith.addf %12, %14 : vector<16x32xf32>
      %c0_14 = arith.constant 0 : index
      %c0_15 = arith.constant 0 : index
      %16 = vector.load %arg6[%c0_14, %c0_15] : memref<16x32xbf16, #tpu.memory_space<vmem>>, vector<16x32xbf16>
      %17 = arith.extf %16 : vector<16x32xbf16> to vector<16x32xf32>
      %18 = arith.addf %15, %17 : vector<16x32xf32>
      %cst_16 = arith.constant dense<0.000000e+00> : vector<16xf32>
      %19 = vector.multi_reduction <add>, %18, %cst_16 [1] : vector<16x32xf32> to vector<16xf32>
      %20 = vector.shape_cast %19 : vector<16xf32> to vector<16x1xf32>
      %cst_17 = arith.constant 3.200000e+01 : f32
      %21 = vector.broadcast %cst_17 : f32 to vector<16x1xf32>
      %22 = arith.divf %20, %21 : vector<16x1xf32>
      %23 = vector.broadcast %22 : vector<16x1xf32> to vector<16x32xf32>
      %24 = arith.subf %18, %23 : vector<16x32xf32>
      %25 = arith.mulf %24, %24 : vector<16x32xf32>
      %cst_18 = arith.constant dense<0.000000e+00> : vector<16xf32>
      %26 = vector.multi_reduction <add>, %25, %cst_18 [1] : vector<16x32xf32> to vector<16xf32>
      %27 = vector.shape_cast %26 : vector<16xf32> to vector<16x1xf32>
      %cst_19 = arith.constant 3.200000e+01 : f32
      %28 = vector.broadcast %cst_19 : f32 to vector<16x1xf32>
      %29 = arith.divf %27, %28 : vector<16x1xf32>
      %cst_20 = arith.constant 9.99999996E-13 : f32
      %30 = vector.broadcast %cst_20 : f32 to vector<16x1xf32>
      %31 = arith.addf %29, %30 : vector<16x1xf32>
      %32 = math.rsqrt %31 : vector<16x1xf32>
      %33 = vector.broadcast %22 : vector<16x1xf32> to vector<16x32xf32>
      %34 = arith.subf %18, %33 : vector<16x32xf32>
      %35 = vector.broadcast %32 : vector<16x1xf32> to vector<16x32xf32>
      %36 = arith.mulf %34, %35 : vector<16x32xf32>
      %c0_21 = arith.constant 0 : index
      %c0_22 = arith.constant 0 : index
      %37 = vector.load %arg7[%c0_21, %c0_22] : memref<1x32xf32, #tpu.memory_space<vmem>>, vector<1x32xf32>
      %38 = vector.broadcast %37 : vector<1x32xf32> to vector<16x32xf32>
      %39 = arith.mulf %36, %38 : vector<16x32xf32>
      %c0_23 = arith.constant 0 : index
      %c0_24 = arith.constant 0 : index
      %40 = vector.load %arg8[%c0_23, %c0_24] : memref<1x32xf32, #tpu.memory_space<vmem>>, vector<1x32xf32>
      %41 = vector.broadcast %40 : vector<1x32xf32> to vector<16x32xf32>
      %42 = arith.addf %39, %41 : vector<16x32xf32>
      %43 = arith.truncf %42 : vector<16x32xf32> to vector<16x32xbf16>
      %c0_25 = arith.constant 0 : index
      %c0_26 = arith.constant 0 : index
      %44 = vector.load %arg9[%c0_25, %c0_26] : memref<16x32xbf16, #tpu.memory_space<vmem>>, vector<16x32xbf16>
      tpu.vector_store %arg9[%c0_25, %c0_26], %43 {strides = array<i32>} : memref<16x32xbf16, #tpu.memory_space<vmem>>, vector<16x32xbf16>,
    } else {
    }
    return
  }
  func.func @transform_0(%arg0: i32, %arg1: i32, %arg2: i32) -> (i32, i32) {
    %c0_i32 = arith.constant 0 : i32
    return %arg0, %arg2 : i32, i32
  }
  func.func @transform_1(%arg0: i32, %arg1: i32, %arg2: i32) -> (i32, i32) {
    %c0_i32 = arith.constant 0 : i32
    return %arg2, %arg1 : i32, i32
  }
  func.func @transform_2(%arg0: i32, %arg1: i32, %arg2: i32) -> (i32, i32) {
    %c0_i32 = arith.constant 0 : i32
    %c0_i32_0 = arith.constant 0 : i32
    return %c0_i32, %arg1 : i32, i32
  }
  func.func @transform_3(%arg0: i32, %arg1: i32, %arg2: i32) -> (i32, i32) {
    %c0_i32 = arith.constant 0 : i32
    return %arg0, %arg1 : i32, i32
  }
  func.func @transform_4(%arg0: i32, %arg1: i32, %arg2: i32) -> (i32, i32) {
    %c0_i32 = arith.constant 0 : i32
    %c0_i32_0 = arith.constant 0 : i32
    return %c0_i32, %arg1 : i32, i32
  }
  func.func @transform_5(%arg0: i32, %arg1: i32, %arg2: i32) -> (i32, i32) {
    %c0_i32 = arith.constant 0 : i32
    %c0_i32_0 = arith.constant 0 : i32
    return %c0_i32, %arg1 : i32, i32
  }
  func.func @transform_6(%arg0: i32, %arg1: i32, %arg2: i32) -> (i32, i32) {
    %c0_i32 = arith.constant 0 : i32
    return %arg0, %arg1 : i32, i32
  }
}

module attributes {stable_mosaic.version = 11 : i64} {
  func.func @_head_kernel(%arg0: i32, %arg1: memref<8x32xbf16, #tpu.memory_space<vmem>>, %arg2: memref<32x32xf32, #tpu.memory_space<vmem>>, %arg3: memref<1x32xf32, #tpu.memory_space<vmem>>, %arg4: memref<32x3xf32, #tpu.memory_space<vmem>>, %arg5: memref<1x3xf32, #tpu.memory_space<vmem>>, %arg6: memref<8x3xf32, #tpu.memory_space<vmem>>) attributes {dimension_semantics = [#tpu.dimension_semantics<arbitrary>], iteration_bounds = array<i64: 1>, scalar_prefetch = 0 : i64, scratch_operands = 0 : i64, tpu.core_type = #tpu.core_type<tc>, window_params = [{pipeline_mode = #tpu.pipeline_mode<synchronous>, transform_indices = @transform_0, window_bounds = array<i64: 8, 32>}, {pipeline_mode = #tpu.pipeline_mode<synchronous>, transform_indices = @transform_1, window_bounds = array<i64: 32, 32>}, {pipeline_mode = #tpu.pipeline_mode<synchronous>, transform_indices = @transform_2, window_bounds = array<i64: 1, 32>}, {pipeline_mode = #tpu.pipeline_mode<synchronous>, transform_indices = @transform_3, window_bounds = array<i64: 32, 3>}, {pipeline_mode = #tpu.pipeline_mode<synchronous>, transform_indices = @transform_4, window_bounds = array<i64: 1, 3>}, {pipeline_mode = #tpu.pipeline_mode<synchronous>, transform_indices = @transform_5, window_bounds = array<i64: 8, 3>}]} {
    %c0 = arith.constant 0 : index
    %c0_0 = arith.constant 0 : index
    %0 = vector.load %arg1[%c0, %c0_0] : memref<8x32xbf16, #tpu.memory_space<vmem>>, vector<8x32xbf16>
    %1 = arith.extf %0 : vector<8x32xbf16> to vector<8x32xf32>
    %c0_1 = arith.constant 0 : index
    %c0_2 = arith.constant 0 : index
    %2 = vector.load %arg2[%c0_1, %c0_2] : memref<32x32xf32, #tpu.memory_space<vmem>>, vector<32x32xf32>
    %cst = arith.constant dense<0.000000e+00> : vector<8x32xf32>
    %3 = tpu.matmul %1, %2, %cst {dimension_numbers = #tpu.dot_dimension_numbers<[1], [0], [0], [1], [0, 0, 1, 1], [], []>} : vector<8x32xf32>, vector<32x32xf32>, vector<8x32xf32> -> vector<8x32xf32>
    %c0_3 = arith.constant 0 : index
    %c0_4 = arith.constant 0 : index
    %4 = vector.load %arg3[%c0_3, %c0_4] : memref<1x32xf32, #tpu.memory_space<vmem>>, vector<1x32xf32>
    %5 = vector.broadcast %4 : vector<1x32xf32> to vector<8x32xf32>
    %6 = arith.addf %3, %5 : vector<8x32xf32>
    %7 = math.tanh %6 : vector<8x32xf32>
    %c0_5 = arith.constant 0 : index
    %c0_6 = arith.constant 0 : index
    %8 = vector.load %arg4[%c0_5, %c0_6] : memref<32x3xf32, #tpu.memory_space<vmem>>, vector<32x3xf32>
    %cst_7 = arith.constant dense<0.000000e+00> : vector<8x3xf32>
    %9 = tpu.matmul %7, %8, %cst_7 {dimension_numbers = #tpu.dot_dimension_numbers<[1], [0], [0], [1], [0, 0, 1, 1], [], []>} : vector<8x32xf32>, vector<32x3xf32>, vector<8x3xf32> -> vector<8x3xf32>
    %c0_8 = arith.constant 0 : index
    %c0_9 = arith.constant 0 : index
    %10 = vector.load %arg5[%c0_8, %c0_9] : memref<1x3xf32, #tpu.memory_space<vmem>>, vector<1x3xf32>
    %11 = vector.broadcast %10 : vector<1x3xf32> to vector<8x3xf32>
    %12 = arith.addf %9, %11 : vector<8x3xf32>
    %c0_10 = arith.constant 0 : index
    %c0_11 = arith.constant 0 : index
    %13 = vector.load %arg6[%c0_10, %c0_11] : memref<8x3xf32, #tpu.memory_space<vmem>>, vector<8x3xf32>
    tpu.vector_store %arg6[%c0_10, %c0_11], %12 {strides = array<i32>} : memref<8x3xf32, #tpu.memory_space<vmem>>, vector<8x3xf32>,
    return
  }
  func.func @transform_0(%arg0: i32) -> (i32, i32) {
    %c0_i32 = arith.constant 0 : i32
    %c0_i32_0 = arith.constant 0 : i32
    %c0_i32_1 = arith.constant 0 : i32
    return %c0_i32, %c0_i32_0 : i32, i32
  }
  func.func @transform_1(%arg0: i32) -> (i32, i32) {
    %c0_i32 = arith.constant 0 : i32
    %c0_i32_0 = arith.constant 0 : i32
    %c0_i32_1 = arith.constant 0 : i32
    return %c0_i32, %c0_i32_0 : i32, i32
  }
  func.func @transform_2(%arg0: i32) -> (i32, i32) {
    %c0_i32 = arith.constant 0 : i32
    %c0_i32_0 = arith.constant 0 : i32
    %c0_i32_1 = arith.constant 0 : i32
    return %c0_i32, %c0_i32_0 : i32, i32
  }
  func.func @transform_3(%arg0: i32) -> (i32, i32) {
    %c0_i32 = arith.constant 0 : i32
    %c0_i32_0 = arith.constant 0 : i32
    %c0_i32_1 = arith.constant 0 : i32
    return %c0_i32, %c0_i32_0 : i32, i32
  }
  func.func @transform_4(%arg0: i32) -> (i32, i32) {
    %c0_i32 = arith.constant 0 : i32
    %c0_i32_0 = arith.constant 0 : i32
    %c0_i32_1 = arith.constant 0 : i32
    return %c0_i32, %c0_i32_0 : i32, i32
  }
  func.func @transform_5(%arg0: i32) -> (i32, i32) {
    %c0_i32 = arith.constant 0 : i32
    %c0_i32_0 = arith.constant 0 : i32
    %c0_i32_1 = arith.constant 0 : i32
    return %c0_i32, %c0_i32_0 : i32, i32
  }
}

</mosaic_0001>

<llo_original>
// kernel: bert_classifier_forward.15
$region0: #{bert_classifier_forward.15}
  #allocation0 [shape = 'u32[]', space=smem, size = 0x4, offset = 0x4, fixed_abs, tag = 'smem constant byte address 0x4 - core index']
  #allocation1 [shape = 'u32[72,128]{1,0:T(1,128)}', space=vmem, size = 0x9000, scoped, tag = 'internal scratch']
  #allocation2 [shape = 'f32[16,32]{1,0:T(8,128)}', space=vmem, size = 0x2000, scoped, tag = 'scratch operand']
  %s0 = inlined_call_operand.vmem [shape: bf16[16,32], index: 0, kind: input, shape index: {}]
  %s1 = inlined_call_operand.vmem [shape: bf16[32,32], index: 1, kind: input, shape index: {}]
  %s2 = inlined_call_operand.vmem [shape: f32[1,32], index: 2, kind: input, shape index: {}]
  %s3 = inlined_call_operand.vmem [shape: bf16[16,32], index: 3, kind: input, shape index: {}]
  %s4 = inlined_call_operand.vmem [shape: f32[1,32], index: 4, kind: input, shape index: {}]
  %s5 = inlined_call_operand.vmem [shape: f32[1,32], index: 5, kind: input, shape index: {}]
  %s6 = inlined_call_operand.vmem [shape: bf16[16,32], index: 6, kind: output, shape index: {}]
  %s7 = sld [smem:[#allocation0]]
  $region42: #{bert_classifier_forward.15} parent=0
    _
  %s9 = ssub.s32 1, %s7
  %s10 = scalar_select 0, %s9, %s7
  // Predicated region
  $region2: #{bert_classifier_forward.15} parent=0 // pred_check
    _
  $region3: #{bert_classifier_forward.15} parent=0 // pred_check_branch
    %12 = sbr.rel (0) target = $region5
  $region4: #{bert_classifier_forward.15} parent=0 // pred_region
    _
  $region5: #{bert_classifier_forward.15} parent=0 // pred_fallthru
    _
  // Predicated region
  $region6: #{bert_classifier_forward.15} parent=0 // pred_check
    _
  $region7: #{bert_classifier_forward.15} parent=0 // pred_check_branch
    %14 = sbr.rel (0) target = $region9
  $region8: #{bert_classifier_forward.15} parent=0 // pred_region
    _
  $region9: #{bert_classifier_forward.15} parent=0 // pred_fallthru
    _
  // Predicated region
  $region10: #{bert_classifier_forward.15} parent=0 // pred_check
    _
  $region11: #{bert_classifier_forward.15} parent=0 // pred_check_branch
    %16 = sbr.rel (0) target = $region13
  $region12: #{bert_classifier_forward.15} parent=0 // pred_region
    _
  $region13: #{bert_classifier_forward.15} parent=0 // pred_fallthru
    _
  // Predicated region
  $region14: #{bert_classifier_forward.15} parent=0 // pred_check
    _
  $region15: #{bert_classifier_forward.15} parent=0 // pred_check_branch
    %18 = sbr.rel (0) target = $region17
  $region16: #{bert_classifier_forward.15} parent=0 // pred_region
    _
  $region17: #{bert_classifier_forward.15} parent=0 // pred_fallthru
    _
  // Predicated region
  $region18: #{bert_classifier_forward.15} parent=0 // pred_check
    _
  $region19: #{bert_classifier_forward.15} parent=0 // pred_check_branch
    %20 = sbr.rel (0) target = $region21
  $region20: #{bert_classifier_forward.15} parent=0 // pred_region
    _
  $region21: #{bert_classifier_forward.15} parent=0 // pred_fallthru
    _
  // Predicated region
  $region22: #{bert_classifier_forward.15} parent=0 // pred_check
    _
  $region23: #{bert_classifier_forward.15} parent=0 // pred_check_branch
    %22 = sbr.rel (0) target = $region25
  $region24: #{bert_classifier_forward.15} parent=0 // pred_region
    _
  $region25: #{bert_classifier_forward.15} parent=0 // pred_fallthru
    _
  %p24 = scmp.eq.s32.totalorder 0, 0
  // Predicated region
  $region26: #{bert_classifier_forward.15} parent=0 // pred_check
    %p25 = pneg %p24
  $region27: #{bert_classifier_forward.15} parent=0 // pred_check_branch
    %27 = sbr.rel (%p25) target = $region29
  $region28: #{bert_classifier_forward.15} parent=0 // pred_region
    %vm28 = vcmask 261120
    %29 = vst.msk [vmem:[#allocation2] sm:$0xff] %vm28, 0.0
    %30 = vst.msk [vmem:[#allocation2 + $0x8] sm:$0xff] %vm28, 0.0
  $region29: #{bert_classifier_forward.15} parent=0 // pred_fallthru
    _
  %v31 = vld [vmem:[#allocation2] sm:$0xff]
  %v32 = vld [vmem:[#allocation2 + $0x8] sm:$0xff]
  %v33 = vld [vmem:[%s0] sm:$0xf]
  %v34 = vld [vmem:[%s0 + $0x4] sm:$0xf]
  %v35 = vld [vmem:[%s1] sm:$0xf]
  %v36 = vld [vmem:[%s1 + $0x4] sm:$0xf]
  %v37 = vld [vmem:[%s1 + $0x8] sm:$0xf]
  %v38 = vld [vmem:[%s1 + $0xc] sm:$0xf]
  %v41 = vunpack.c.l.b16 %v33
  %v42 = vunpack.c.l.b16 %v34
  %v43 = vpack.c.b16 %v42, %v41
  %v48 = vunpack.c.l.b16 %v35
  %v49 = vunpack.c.l.b16 %v36
  %v50 = vunpack.c.l.b16 %v37
  %v51 = vunpack.c.l.b16 %v38
  %v52 = vpack.c.b16 %v49, %v48
  %v53 = vpack.c.b16 %v51, %v50
  %vm56 = vcmask 261120
  %v58 = vsel %vm56, %v43, 0
  %60 = vmatpush.bf16.msra.mxu0 0
  %61 = vmatpush.bf16.msra.mxu0 0
  %62 = vmatpush.bf16.msra.mxu0 0
  %63 = vmatpush.bf16.msra.mxu0 0
  %64 = vmatpush.bf16.msra.mxu0 0
  %65 = vmatpush.bf16.msra.mxu0 0
  %66 = vmatpush.bf16.msra.mxu0 %v53
  %67 = vmatpush.bf16.msra.mxu0 %v52
  %68 = vmatmul.bf16.gmra.mxu0 %v58
  %v69 = vpop.f32.mrf.mxu0
  %v70 = vadd.f32 0.0, %v69
  %v71 = vpop.f32.mrf.mxu0
  %v72 = vadd.f32 0.0, %v71
  %73 = vdwg.mxu0
  %v74 = vadd.f32 %v31, %v70
  %v75 = vadd.f32 %v32, %v72
  %76 = vst.msk [vmem:[#allocation2] sm:$0xff] %vm56, %v74
  %77 = vst.msk [vmem:[#allocation2 + $0x8] sm:$0xff] %vm56, %v75
  // Predicated region
  $region30: #{bert_classifier_forward.15} parent=0 // pred_check
    %p78 = pneg %p24
  $region31: #{bert_classifier_forward.15} parent=0 // pred_check_branch
    %80 = sbr.rel (%p78) target = $region33
  $region32: #{bert_classifier_forward.15} parent=0 // pred_region
    %v81 = vld [vmem:[#allocation2] sm:$0xff]
    %v82 = vld [vmem:[#allocation2 + $0x8] sm:$0xff]
    %v83 = vld [vmem:[%s2] sm:$0x1]
    %v85 = vperm.slane %v83, 0
    %v87 = vadd.f32 %v81, %v85
    %v88 = vadd.f32 %v82, %v85
    %v89 = vld [vmem:[%s3] sm:$0xf]
    %v90 = vld [vmem:[%s3 + $0x4] sm:$0xf]
    %v91 = vunpack.c.l.bf16 %v89
    %v92 = vunpack.c.l.bf16 %v90
    %v93 = vadd.f32 %v87, %v91
    %v94 = vadd.f32 %v88, %v92
    %v95 = vsel %vm56, %v93, 0.0
    %96 = vadd.xlane.f32.xlu0 %v95
    %v97 = vpop.xlane.xlu0 %96
    %v98 = vsel %vm56, %v94, 0.0
    %99 = vadd.xlane.f32.xlu0 %v98
    %v100 = vpop.xlane.xlu0 %99
    %v101 = vrcp.pop 32.0
    %v102 = vmul.f32 32.0, %v101
    %v103 = vsub.f32 1.0, %v102
    %v104 = vmul.f32 %v101, %v103
    %v105 = vadd.f32 %v101, %v104
    %vm106 = vweird.f32 %v101
    %v107 = vsel %vm106, %v101, %v105
    %v108 = vmul.f32 %v97, %v107
    %v109 = vmul.f32 %v100, %v107
    %v110 = vsub.f32 %v93, %v108
    %v111 = vsub.f32 %v94, %v109
    %v112 = vmul.f32 %v110, %v110
    %v113 = vmul.f32 %v111, %v111
    %v114 = vsel %vm56, %v112, 0.0
    %115 = vadd.xlane.f32.xlu0 %v114
    %v116 = vpop.xlane.xlu0 %115
    %v117 = vsel %vm56, %v113, 0.0
    %118 = vadd.xlane.f32.xlu0 %v117
    %v119 = vpop.xlane.xlu0 %118
    %v120 = vmul.f32 %v116, %v107
    %v121 = vmul.f32 %v119, %v107
    %v122 = vadd.f32 %v120, 1e-12
    %v123 = vadd.f32 %v121, 1e-12
    %v124 = vrsqrt.pop %v122
    %v125 = vmul.f32 %v124, %v122
    %v126 = vmul.f32 %v125, %v124
    %v127 = vmul.f32 0.5, %v126
    %v128 = vsub.f32 1.5, %v127
    %v129 = vmul.f32 %v124, %v128
    %vm130 = vweird.f32 %v122
    %vm131 = vweird.f32 %v124
    %vm132 = vmor %vm130, %vm131
    %v133 = vsel %vm132, %v124, %v129
    %v134 = vrsqrt.pop %v123
    %v135 = vmul.f32 %v134, %v123
    %v136 = vmul.f32 %v135, %v134
    %v137 = vmul.f32 0.5, %v136
    %v138 = vsub.f32 1.5, %v137
    %v139 = vmul.f32 %v134, %v138
    %vm140 = vweird.f32 %v123
    %vm141 = vweird.f32 %v134
    %vm142 = vmor %vm140, %vm141
    %v143 = vsel %vm142, %v134, %v139
    %v144 = vmul.f32 %v110, %v133
    %v145 = vmul.f32 %v111, %v143
    %v146 = vld [vmem:[%s4] sm:$0x1]
    %v148 = vperm.slane %v146, 0
    %v150 = vmul.f32 %v144, %v148
    %v151 = vmul.f32 %v145, %v148
    %v152 = vld [vmem:[%s5] sm:$0x1]
    %v154 = vperm.slane %v152, 0
    %v156 = vadd.f32 %v150, %v154
    %v157 = vadd.f32 %v151, %v154
    %v158 = vpack.c.bf16 %v156, %v156
    %v159 = vpack.c.bf16 %v157, %v157
    %vm160 = vcmask 257024
    %161 = vst.msk [vmem:[%s6] sm:$0xf] %vm160, %v158
    %162 = vst.msk [vmem:[%s6 + $0x4] sm:$0xf] %vm160, %v159
  $region33: #{bert_classifier_forward.15} parent=0 // pred_fallthru
    _
  // Predicated region
  $region34: #{bert_classifier_forward.15} parent=0 // pred_check
    _
  $region35: #{bert_classifier_forward.15} parent=0 // pred_check_branch
    %164 = sbr.rel (0) target = $region37
  $region36: #{bert_classifier_forward.15} parent=0 // pred_region
    _
  $region37: #{bert_classifier_forward.15} parent=0 // pred_fallthru
    _
  // Predicated region
  $region38: #{bert_classifier_forward.15} parent=0 // pred_check
    _
  $region39: #{bert_classifier_forward.15} parent=0 // pred_check_branch
    %166 = sbr.rel (0) target = $region41
  $region40: #{bert_classifier_forward.15} parent=0 // pred_region
    _
  $region41: #{bert_classifier_forward.15} parent=0 // pred_fallthru
    _

// kernel: bert_classifier_forward.14
$region0: #{bert_classifier_forward.14}
  #allocation0 [shape = 'u32[]', space=smem, size = 0x4, offset = 0x4, fixed_abs, tag = 'smem constant byte address 0x4 - core index']
  #allocation1 [shape = 'u32[72,128]{1,0:T(1,128)}', space=vmem, size = 0x9000, scoped, tag = 'internal scratch']
  #allocation2 [shape = 'f32[8,1]{1,0:T(8,128)}', space=vmem, size = 0x1000, scoped, tag = 'scratch operand']
  #allocation3 [shape = 'f32[8,1]{1,0:T(8,128)}', space=vmem, size = 0x1000, scoped, tag = 'scratch operand']
  #allocation4 [shape = 'f32[8,16]{1,0:T(8,128)}', space=vmem, size = 0x1000, scoped, tag = 'scratch operand']
  %s0 = inlined_call_operand.vmem [shape: bf16[2,2,3,8,16], index: 0, kind: input, shape index: {}, may-alias: {0,1,2}]
  %s1 = inlined_call_operand.vmem [shape: bf16[2,2,3,8,16], index: 1, kind: input, shape index: {}, may-alias: {0,1,2}]
  %s2 = inlined_call_operand.vmem [shape: bf16[2,2,3,8,16], index: 2, kind: input, shape index: {}, may-alias: {0,1,2}]
  %s3 = inlined_call_operand.vmem [shape: f32[2,1,8], index: 3, kind: input, shape index: {}]
  %s4 = inlined_call_operand.vmem [shape: bf16[2,2,8,16], index: 4, kind: output, shape index: {}]
  %s5 = sld [smem:[#allocation0]]
  $region57: #{bert_classifier_forward.14} parent=0
    _
  %s7 = ssub.s32 1, %s5
  %s8 = scalar_select 0, %s7, %s5
  loop: start=0, step=1, limit=6
  $region2: #{bert_classifier_forward.14} parent=0 // loop_pre_header
    _
  $region3: #{bert_classifier_forward.14} parent=0 // loop_header
    %s10 = sphi 0, %s14
    %p11 = scmp.ge.s32.totalorder %s10, 6
    %s17 = sphi 0, %s36
    %s18 = sphi 0, %s32
    %s19 = sphi 0, %s28
    %s20 = sphi 0, %s17
    %s21 = sphi 0, %s18
    %s22 = sphi 0, %s19
    %s23 = sphi 0, %s20
    %s24 = sphi 0, %s21
    %s25 = sphi 0, %s22
    %s41 = sphi 0, %s43
    %s44 = sphi 0, %s41
    %s45 = sphi 0, %s44
    %s61 = sphi 0, %s45
    %s71 = sphi 0, %s73
    %s74 = sphi 0, %s71
    %s75 = sphi 0, %s74
    %s91 = sphi 0, %s75
    %s101 = sphi 0, %s103
    %s104 = sphi 0, %s101
    %s105 = sphi 0, %s104
    %s121 = sphi 0, %s105
    %s129 = sphi 0, %s131
    %s132 = sphi 0, %s129
    %s133 = sphi 0, %s132
    %s149 = sphi 0, %s133
    %s157 = sphi 0, %s159
    %s160 = sphi 0, %s157
    %s161 = sphi 0, %s160
    %s177 = sphi 0, %s161
  $region4: #{bert_classifier_forward.14} parent=0 // loop_header_branch
    %13 = sbr.rel (%p11) target = $region8
  $region5: #{bert_classifier_forward.14} parent=0 // loop_body
    %s15 = ssub.s32 %s10, 1
    %s16 = ssub.s32 %s10, 2
    %s26 = sadd.s32 1, %s19
    %p27 = scmp.ge.s32.totalorder %s26, 1
    %s28 = scalar_select %p27, 0, %s26
    %s29 = sadd.s32 1, %s18
    %s30 = scalar_select %p27, %s29, %s18
    %p31 = scmp.ge.s32.totalorder %s30, 2
    %s32 = scalar_select %p31, 0, %s30
    %s33 = sadd.s32 1, %s17
    %s34 = scalar_select %p31, %s33, %s17
    %p35 = scmp.ge.s32.totalorder %s34, 2
    %s36 = scalar_select %p35, 0, %s34
    %s37 = ssub.s32 %s17, %s36
    %s38 = ssub.s32 %s18, %s32
    %s39 = sor.u32 %s37, %s38
    %p40 = scmp.eq.s32.totalorder %s39, 0
    %s42 = sadd.s32 %s41, 1
    %s43 = scalar_select %p40, %s41, %s42
    %p46 = pneg %p40
    %p47 = scmp.eq.s32.totalorder %s10, 3
    %p48 = por %p46, %p47
    %p49 = scmp.ne.s32.totalorder %s41, %s44
    %p50 = scmp.eq.s32.totalorder %s10, 0
    %p51 = por %p49, %p50
    %p52 = scmp.ne.s32.totalorder %s41, %s44
    %p53 = scmp.eq.s32.totalorder %s15, 3
    %p54 = por %p52, %p53
    %p55 = scmp.ne.s32.totalorder %s44, %s45
    %p56 = scmp.eq.s32.totalorder %s15, 0
    %p57 = por %p55, %p56
    %p58 = scmp.ne.s32.totalorder %s44, %s45
    %p59 = scmp.eq.s32.totalorder %s16, 3
    %p60 = por %p58, %p59
    %p62 = scmp.ne.s32.totalorder %s45, %s61
    %p63 = scmp.eq.s32.totalorder %s16, 0
    %p64 = por %p62, %p63
    %s65 = ssub.s32 %s17, %s36
    %s66 = ssub.s32 %s18, %s32
    %s67 = sor.u32 %s65, %s66
    %s68 = ssub.s32 %s19, %s28
    %s69 = sor.u32 %s67, %s68
    %p70 = scmp.eq.s32.totalorder %s69, 0
    %s72 = sadd.s32 %s71, 1
    %s73 = scalar_select %p70, %s71, %s72
    %p76 = pneg %p70
    %p77 = scmp.eq.s32.totalorder %s10, 3
    %p78 = por %p76, %p77
    %p79 = scmp.ne.s32.totalorder %s71, %s74
    %p80 = scmp.eq.s32.totalorder %s10, 0
    %p81 = por %p79, %p80
    %p82 = scmp.ne.s32.totalorder %s71, %s74
    %p83 = scmp.eq.s32.totalorder %s15, 3
    %p84 = por %p82, %p83
    %p85 = scmp.ne.s32.totalorder %s74, %s75
    %p86 = scmp.eq.s32.totalorder %s15, 0
    %p87 = por %p85, %p86
    %p88 = scmp.ne.s32.totalorder %s74, %s75
    %p89 = scmp.eq.s32.totalorder %s16, 3
    %p90 = por %p88, %p89
    %p92 = scmp.ne.s32.totalorder %s75, %s91
    %p93 = scmp.eq.s32.totalorder %s16, 0
    %p94 = por %p92, %p93
    %s95 = ssub.s32 %s17, %s36
    %s96 = ssub.s32 %s18, %s32
    %s97 = sor.u32 %s95, %s96
    %s98 = ssub.s32 %s19, %s28
    %s99 = sor.u32 %s97, %s98
    %p100 = scmp.eq.s32.totalorder %s99, 0
    %s102 = sadd.s32 %s101, 1
    %s103 = scalar_select %p100, %s101, %s102
    %p106 = pneg %p100
    %p107 = scmp.eq.s32.totalorder %s10, 3
    %p108 = por %p106, %p107
    %p109 = scmp.ne.s32.totalorder %s101, %s104
    %p110 = scmp.eq.s32.totalorder %s10, 0
    %p111 = por %p109, %p110
    %p112 = scmp.ne.s32.totalorder %s101, %s104
    %p113 = scmp.eq.s32.totalorder %s15, 3
    %p114 = por %p112, %p113
    %p115 = scmp.ne.s32.totalorder %s104, %s105
    %p116 = scmp.eq.s32.totalorder %s15, 0
    %p117 = por %p115, %p116
    %p118 = scmp.ne.s32.totalorder %s104, %s105
    %p119 = scmp.eq.s32.totalorder %s16, 3
    %p120 = por %p118, %p119
    %p122 = scmp.ne.s32.totalorder %s105, %s121
    %p123 = scmp.eq.s32.totalorder %s16, 0
    %p124 = por %p122, %p123
    %s125 = ssub.s32 %s17, %s36
    %s126 = ssub.s32 %s19, %s28
    %s127 = sor.u32 %s125, %s126
    %p128 = scmp.eq.s32.totalorder %s127, 0
    %s130 = sadd.s32 %s129, 1
    %s131 = scalar_select %p128, %s129, %s130
    %p134 = pneg %p128
    %p135 = scmp.eq.s32.totalorder %s10, 3
    %p136 = por %p134, %p135
    %p137 = scmp.ne.s32.totalorder %s129, %s132
    %p138 = scmp.eq.s32.totalorder %s10, 0
    %p139 = por %p137, %p138
    %p140 = scmp.ne.s32.totalorder %s129, %s132
    %p141 = scmp.eq.s32.totalorder %s15, 3
    %p142 = por %p140, %p141
    %p143 = scmp.ne.s32.totalorder %s132, %s133
    %p144 = scmp.eq.s32.totalorder %s15, 0
    %p145 = por %p143, %p144
    %p146 = scmp.ne.s32.totalorder %s132, %s133
    %p147 = scmp.eq.s32.totalorder %s16, 3
    %p148 = por %p146, %p147
    %p150 = scmp.ne.s32.totalorder %s133, %s149
    %p151 = scmp.eq.s32.totalorder %s16, 0
    %p152 = por %p150, %p151
    %s153 = ssub.s32 %s17, %s36
    %s154 = ssub.s32 %s18, %s32
    %s155 = sor.u32 %s153, %s154
    %p156 = scmp.eq.s32.totalorder %s155, 0
    %s158 = sadd.s32 %s157, 1
    %s159 = scalar_select %p156, %s157, %s158
    %p162 = pneg %p156
    %p163 = scmp.eq.s32.totalorder %s10, 3
    %p164 = por %p162, %p163
    %p165 = scmp.ne.s32.totalorder %s157, %s160
    %p166 = scmp.eq.s32.totalorder %s10, 0
    %p167 = por %p165, %p166
    %p168 = scmp.ne.s32.totalorder %s157, %s160
    %p169 = scmp.eq.s32.totalorder %s15, 3
    %p170 = por %p168, %p169
    %p171 = scmp.ne.s32.totalorder %s160, %s161
    %p172 = scmp.eq.s32.totalorder %s15, 0
    %p173 = por %p171, %p172
    %p174 = scmp.ne.s32.totalorder %s160, %s161
    %p175 = scmp.eq.s32.totalorder %s16, 3
    %p176 = por %p174, %p175
    %p178 = scmp.ne.s32.totalorder %s161, %s177
    %p179 = scmp.eq.s32.totalorder %s16, 0
    %p180 = por %p178, %p179
    %p181 = scmp.le.s32.totalorder 1, %s10
    %p182 = scmp.lt.s32.totalorder %s10, 5
    %p183 = pnand %p181, %p182
    %p184 = pneg %p183
    // Predicated region
    $region9: #{bert_classifier_forward.14} parent=5 // pred_check
      _
    $region10: #{bert_classifier_forward.14} parent=5 // pred_check_branch
      %186 = sbr.rel (%p183) target = $region12
    $region11: #{bert_classifier_forward.14} parent=5 // pred_region
      %s187 = ssub.s32 %s10, 1
    $region12: #{bert_classifier_forward.14} parent=5 // pred_fallthru
      _
    %p188 = scmp.lt.s32.totalorder %s10, 4
    // Predicated region
    $region13: #{bert_classifier_forward.14} parent=5 // pred_check
      %p189 = pneg %p188
    $region14: #{bert_classifier_forward.14} parent=5 // pred_check_branch
      %191 = sbr.rel (%p189) target = $region16
    $region15: #{bert_classifier_forward.14} parent=5 // pred_region
      // Predicated region
      $region17: #{bert_classifier_forward.14} parent=15 // pred_check
        %p192 = pneg %p51
      $region18: #{bert_classifier_forward.14} parent=15 // pred_check_branch
        %194 = sbr.rel (%p192) target = $region20
      $region19: #{bert_classifier_forward.14} parent=15 // pred_region
        %p195 = scmp.lt.s32.totalorder %s17, 1
        %s196 = scalar_select %p195, %s17, 1
        %p197 = scmp.lt.s32.totalorder %s18, 1
        %s198 = scalar_select %p197, %s18, 1
        %s199 = smul.addr %s198, 3
        %s200 = smul.addr %s196, 6
        %s201 = sadd.s32 %s199, %s200
        %s202 = smul.addr %s201, 4
        %s203 = scalar_lea.vmem %s0, %s202
      $region20: #{bert_classifier_forward.14} parent=15 // pred_fallthru
        _
      // Predicated region
      $region21: #{bert_classifier_forward.14} parent=15 // pred_check
        %p204 = pneg %p81
      $region22: #{bert_classifier_forward.14} parent=15 // pred_check_branch
        %206 = sbr.rel (%p204) target = $region24
      $region23: #{bert_classifier_forward.14} parent=15 // pred_region
        %p207 = scmp.lt.s32.totalorder %s17, 1
        %s208 = scalar_select %p207, %s17, 1
        %p209 = scmp.lt.s32.totalorder %s18, 1
        %s210 = scalar_select %p209, %s18, 1
        %p211 = scmp.lt.s32.totalorder %s19, 0
        %s212 = scalar_select %p211, %s19, 0
        %s213 = sadd.s32 %s212, 1
        %s214 = smul.addr %s210, 3
        %s215 = sadd.s32 %s213, %s214
        %s216 = smul.addr %s208, 6
        %s217 = sadd.s32 %s215, %s216
        %s218 = smul.addr %s217, 4
        %s219 = scalar_lea.vmem %s1, %s218
      $region24: #{bert_classifier_forward.14} parent=15 // pred_fallthru
        _
      // Predicated region
      $region25: #{bert_classifier_forward.14} parent=15 // pred_check
        %p220 = pneg %p111
      $region26: #{bert_classifier_forward.14} parent=15 // pred_check_branch
        %222 = sbr.rel (%p220) target = $region28
      $region27: #{bert_classifier_forward.14} parent=15 // pred_region
        %p223 = scmp.lt.s32.totalorder %s17, 1
        %s224 = scalar_select %p223, %s17, 1
        %p225 = scmp.lt.s32.totalorder %s18, 1
        %s226 = scalar_select %p225, %s18, 1
        %p227 = scmp.lt.s32.totalorder %s19, 0
        %s228 = scalar_select %p227, %s19, 0
        %s229 = sadd.s32 %s228, 2
        %s230 = smul.addr %s226, 3
        %s231 = sadd.s32 %s229, %s230
        %s232 = smul.addr %s224, 6
        %s233 = sadd.s32 %s231, %s232
        %s234 = smul.addr %s233, 4
        %s235 = scalar_lea.vmem %s2, %s234
      $region28: #{bert_classifier_forward.14} parent=15 // pred_fallthru
        _
      // Predicated region
      $region29: #{bert_classifier_forward.14} parent=15 // pred_check
        %p236 = pneg %p139
      $region30: #{bert_classifier_forward.14} parent=15 // pred_check_branch
        %238 = sbr.rel (%p236) target = $region32
      $region31: #{bert_classifier_forward.14} parent=15 // pred_region
        %p239 = scmp.lt.s32.totalorder %s17, 1
        %s240 = scalar_select %p239, %s17, 1
        %p241 = scmp.lt.s32.totalorder %s19, 0
        %s242 = scalar_select %p241, %s19, 0
        %s243 = sadd.s32 %s242, %s240
        %s244 = scalar_lea.vmem %s3, %s243
      $region32: #{bert_classifier_forward.14} parent=15 // pred_fallthru
        _
    $region16: #{bert_classifier_forward.14} parent=5 // pred_fallthru
      _
    %p245 = scmp.le.s32.totalorder 1, %s10
    %p246 = scmp.lt.s32.totalorder %s10, 5
    %p247 = pnand %p245, %p246
    %p248 = pneg %p247
    // Predicated region
    $region33: #{bert_classifier_forward.14} parent=5 // pred_check
      _
    $region34: #{bert_classifier_forward.14} parent=5 // pred_check_branch
      %250 = sbr.rel (%p247) target = $region36
    $region35: #{bert_classifier_forward.14} parent=5 // pred_region
      %s251 = ssub.s32 %s10, 1
      %p252 = scmp.lt.s32.totalorder %s20, 1
      %s253 = scalar_select %p252, %s20, 1
      %p254 = scmp.lt.s32.totalorder %s21, 1
      %s255 = scalar_select %p254, %s21, 1
      %s256 = smul.addr %s255, 3
      %s257 = smul.addr %s253, 6
      %s258 = sadd.s32 %s256, %s257
      %s259 = smul.addr %s258, 4
      %s260 = scalar_lea.vmem %s0, %s259
      %p261 = pneg %p57
      %p262 = pneg %p54
      %p263 = scmp.lt.s32.totalorder %s20, 1
      %s264 = scalar_select %p263, %s20, 1
      %p265 = scmp.lt.s32.totalorder %s21, 1
      %s266 = scalar_select %p265, %s21, 1
      %p267 = scmp.lt.s32.totalorder %s22, 0
      %s268 = scalar_select %p267, %s22, 0
      %s269 = sadd.s32 %s268, 1
      %s270 = smul.addr %s266, 3
      %s271 = sadd.s32 %s269, %s270
      %s272 = smul.addr %s264, 6
      %s273 = sadd.s32 %s271, %s272
      %s274 = smul.addr %s273, 4
      %s275 = scalar_lea.vmem %s1, %s274
      %p276 = pneg %p87
      %p277 = pneg %p84
      %p278 = scmp.lt.s32.totalorder %s20, 1
      %s279 = scalar_select %p278, %s20, 1
      %p280 = scmp.lt.s32.totalorder %s21, 1
      %s281 = scalar_select %p280, %s21, 1
      %p282 = scmp.lt.s32.totalorder %s22, 0
      %s283 = scalar_select %p282, %s22, 0
      %s284 = sadd.s32 %s283, 2
      %s285 = smul.addr %s281, 3
      %s286 = sadd.s32 %s284, %s285
      %s287 = smul.addr %s279, 6
      %s288 = sadd.s32 %s286, %s287
      %s289 = smul.addr %s288, 4
      %s290 = scalar_lea.vmem %s2, %s289
      %p291 = pneg %p117
      %p292 = pneg %p114
      %p293 = scmp.lt.s32.totalorder %s20, 1
      %s294 = scalar_select %p293, %s20, 1
      %p295 = scmp.lt.s32.totalorder %s22, 0
      %s296 = scalar_select %p295, %s22, 0
      %s297 = sadd.s32 %s296, %s294
      %s298 = scalar_lea.vmem %s3, %s297
      %p299 = pneg %p145
      %p300 = pneg %p142
      %p301 = pneg %p173
      %p302 = pneg %p170
      %p303 = scmp.lt.s32.totalorder %s20, 1
      %s304 = scalar_select %p303, %s20, 1
      %p305 = scmp.lt.s32.totalorder %s21, 1
      %s306 = scalar_select %p305, %s21, 1
      %s307 = smul.addr %s304, 2
      %s308 = sadd.s32 %s306, %s307
      %s309 = smul.addr %s308, 4
      %s310 = scalar_lea.vmem %s4, %s309
      %p311 = scmp.lt.s32.totalorder %s20, 1
      %s312 = scalar_select %p311, %s20, 1
      %p313 = scmp.lt.s32.totalorder %s21, 1
      %s314 = scalar_select %p313, %s21, 1
      %s315 = smul.addr %s314, 3
      %s316 = smul.addr %s312, 6
      %s317 = sadd.s32 %s315, %s316
      %s318 = smul.addr %s317, 4
      %s319 = scalar_lea.vmem %s0, %s318
      %p320 = scmp.lt.s32.totalorder %s20, 1
      %s321 = scalar_select %p320, %s20, 1
      %p322 = scmp.lt.s32.totalorder %s21, 1
      %s323 = scalar_select %p322, %s21, 1
      %p324 = scmp.lt.s32.totalorder %s22, 0
      %s325 = scalar_select %p324, %s22, 0
      %s326 = sadd.s32 %s325, 1
      %s327 = smul.addr %s323, 3
      %s328 = sadd.s32 %s326, %s327
      %s329 = smul.addr %s321, 6
      %s330 = sadd.s32 %s328, %s329
      %s331 = smul.addr %s330, 4
      %s332 = scalar_lea.vmem %s1, %s331
      %p333 = scmp.lt.s32.totalorder %s20, 1
      %s334 = scalar_select %p333, %s20, 1
      %p335 = scmp.lt.s32.totalorder %s21, 1
      %s336 = scalar_select %p335, %s21, 1
      %p337 = scmp.lt.s32.totalorder %s22, 0
      %s338 = scalar_select %p337, %s22, 0
      %s339 = sadd.s32 %s338, 2
      %s340 = smul.addr %s336, 3
      %s341 = sadd.s32 %s339, %s340
      %s342 = smul.addr %s334, 6
      %s343 = sadd.s32 %s341, %s342
      %s344 = smul.addr %s343, 4
      %s345 = scalar_lea.vmem %s2, %s344
      %p346 = scmp.lt.s32.totalorder %s20, 1
      %s347 = scalar_select %p346, %s20, 1
      %p348 = scmp.lt.s32.totalorder %s22, 0
      %s349 = scalar_select %p348, %s22, 0
      %s350 = sadd.s32 %s349, %s347
      %s351 = scalar_lea.vmem %s3, %s350
      %p352 = scmp.lt.s32.totalorder %s20, 1
      %s353 = scalar_select %p352, %s20, 1
      %p354 = scmp.lt.s32.totalorder %s21, 1
      %s355 = scalar_select %p354, %s21, 1
      %s356 = smul.addr %s353, 2
      %s357 = sadd.s32 %s355, %s356
      %s358 = smul.addr %s357, 4
      %s359 = scalar_lea.vmem %s4, %s358
      %p361 = scmp.eq.s32.totalorder %s22, 0
      // Predicated region
      $region37: #{bert_classifier_forward.14} parent=35 // pred_check
        %p362 = pneg %p361
      $region38: #{bert_classifier_forward.14} parent=35 // pred_check_branch
        %364 = sbr.rel (%p362) target = $region40
      $region39: #{bert_classifier_forward.14} parent=35 // pred_region
        %vm365 = vcmask 7168
        %366 = vst.msk [vmem:[#allocation2] sm:$0xff] %vm365, -inf
        %367 = vst.msk [vmem:[#allocation3] sm:$0xff] %vm365, 0.0
        %vm368 = vcmask 130048
        %369 = vst.msk [vmem:[#allocation4] sm:$0xff] %vm368, 0.0
      $region40: #{bert_classifier_forward.14} parent=35 // pred_fallthru
        _
      %v370 = vld [vmem:[%s319] sm:$0xf]
      %v371 = vld [vmem:[%s332] sm:$0xf]
      %vm372 = vcmask 130048
      %v374 = vsel %vm372, %v370, 0
      %v377 = vsel %vm372, %v371, 0
      %379 = vmatpush.bf16.xpose.msra.mxu0 0
      %380 = vmatpush.bf16.xpose.msra.mxu0 0
      %381 = vmatpush.bf16.xpose.msra.mxu0 0
      %382 = vmatpush.bf16.xpose.msra.mxu0 0
      %383 = vmatpush.bf16.xpose.msra.mxu0 0
      %384 = vmatpush.bf16.xpose.msra.mxu0 0
      %385 = vmatpush.bf16.xpose.msra.mxu0 0
      %386 = vmatpush.bf16.xpose.msra.mxu0 %v377
      %387 = vmatmul.bf16.gmra.mxu0 %v374
      %v388 = vpop.f32.mrf.mxu0
      %v389 = vadd.f32 0.0, %v388
      %v390 = vpop.f32.mrf.mxu0
      %391 = vdwg.mxu0
      %v392 = vmul.f32 %v389, 0.25
      %v393 = vld [vmem:[%s351] sm:$0x1]
      %v395 = vperm.slane %v393, 0
      %v397 = vadd.f32 %v392, %v395
      %v398 = vld [vmem:[#allocation2] sm:$0xff]
      %vm399 = vcmask 64512
      %v400 = vsel %vm399, %v397, -inf
      %401 = vmax.xlane.f32.xlu0 %v400
      %v402 = vpop.xlane.xlu0 %401
      %v403 = vmax.f32 %v398, %v402
      %v404 = vsub.f32 %v398, %v403
      %v405 = vmul.f32 %v404, 1.442695
      %v406 = vpow.pop %v405
      %408 = vset.pattern.permute.xlu0 0
      %409 = vperm.xlu0 %408, %v403
      %v410 = vpop.permute.xlu0 %409
      %v412 = vsub.f32 %v397, %v410
      %v413 = vmul.f32 %v412, 1.442695
      %v414 = vpow.pop %v413
      %v415 = vld [vmem:[#allocation3] sm:$0xff]
      %v416 = vmul.f32 %v406, %v415
      %v417 = vsel %vm399, %v414, 0.0
      %418 = vadd.xlane.f32.xlu0 %v417
      %v419 = vpop.xlane.xlu0 %418
      %v420 = vadd.f32 %v416, %v419
      %vm421 = vcmask 7168
      %422 = vst.msk [vmem:[#allocation3] sm:$0xff] %vm421, %v420
      %v423 = vld [vmem:[#allocation4] sm:$0xff]
      %425 = vset.pattern.permute.xlu0 0
      %426 = vperm.xlu0 %425, %v406
      %v427 = vpop.permute.xlu0 %426
      %v429 = vmul.f32 %v427, %v423
      %v430 = vpack.c.bf16 %v414, %v414
      %v431 = vld [vmem:[%s345] sm:$0xf]
      %v433 = vsel %vm399, %v430, 0
      %vm435 = vcmask 1043456
      %v437 = vsel %vm435, %v431, 0
      %439 = vmatpush.bf16.msra.mxu0 0
      %440 = vmatpush.bf16.msra.mxu0 0
      %441 = vmatpush.bf16.msra.mxu0 0
      %442 = vmatpush.bf16.msra.mxu0 0
      %443 = vmatpush.bf16.msra.mxu0 0
      %444 = vmatpush.bf16.msra.mxu0 0
      %445 = vmatpush.bf16.msra.mxu0 0
      %446 = vmatpush.bf16.msra.mxu0 %v437
      %447 = vmatmul.bf16.gmra.mxu0 %v433
      %v448 = vpop.f32.mrf.mxu0
      %v449 = vadd.f32 0.0, %v448
      %v450 = vpop.f32.mrf.mxu0
      %451 = vdwg.mxu0
      %v452 = vadd.f32 %v429, %v449
      %453 = vst.msk [vmem:[#allocation4] sm:$0xff] %vm372, %v452
      %454 = vst.msk [vmem:[#allocation2] sm:$0xff] %vm421, %v403
      // Predicated region
      $region41: #{bert_classifier_forward.14} parent=35 // pred_check
        %p455 = pneg %p361
      $region42: #{bert_classifier_forward.14} parent=35 // pred_check_branch
        %457 = sbr.rel (%p455) target = $region44
      $region43: #{bert_classifier_forward.14} parent=35 // pred_region
        %v458 = vld [vmem:[#allocation4] sm:$0xff]
        %v459 = vld [vmem:[#allocation3] sm:$0xff]
        %v460 = vrcp.pop %v459
        %462 = vset.pattern.permute.xlu0 0
        %463 = vperm.xlu0 %462, %v460
        %v464 = vpop.permute.xlu0 %463
        %v466 = vmul.f32 %v458, %v464
        %v467 = vpack.c.bf16 %v466, %v466
        %vm468 = vcmask 125952
        %469 = vst.msk [vmem:[%s359] sm:$0xf] %vm468, %v467
      $region44: #{bert_classifier_forward.14} parent=35 // pred_fallthru
        _
      %p470 = scmp.lt.s32.totalorder %s20, 1
      %s471 = scalar_select %p470, %s20, 1
      %p472 = scmp.lt.s32.totalorder %s21, 1
      %s473 = scalar_select %p472, %s21, 1
      %s474 = smul.addr %s471, 2
      %s475 = sadd.s32 %s473, %s474
      %s476 = smul.addr %s475, 4
      %s477 = scalar_lea.vmem %s4, %s476
      // Predicated region
      $region45: #{bert_classifier_forward.14} parent=35 // pred_check
        %p478 = pneg %p170
      $region46: #{bert_classifier_forward.14} parent=35 // pred_check_branch
        %480 = sbr.rel (%p478) target = $region48
      $region47: #{bert_classifier_forward.14} parent=35 // pred_region
        _
      $region48: #{bert_classifier_forward.14} parent=35 // pred_fallthru
        _
    $region36: #{bert_classifier_forward.14} parent=5 // pred_fallthru
      _
    %p481 = scmp.le.s32.totalorder 2, %s10
    // Predicated region
    $region49: #{bert_classifier_forward.14} parent=5 // pred_check
      %p482 = pneg %p481
    $region50: #{bert_classifier_forward.14} parent=5 // pred_check_branch
      %484 = sbr.rel (%p482) target = $region52
    $region51: #{bert_classifier_forward.14} parent=5 // pred_region
      %s485 = ssub.s32 %s10, 2
      // Predicated region
      $region53: #{bert_classifier_forward.14} parent=51 // pred_check
        %p486 = pneg %p176
      $region54: #{bert_classifier_forward.14} parent=51 // pred_check_branch
        %488 = sbr.rel (%p486) target = $region56
      $region55: #{bert_classifier_forward.14} parent=51 // pred_region
        %p489 = scmp.lt.s32.totalorder %s23, 1
        %s490 = scalar_select %p489, %s23, 1
        %p491 = scmp.lt.s32.totalorder %s24, 1
        %s492 = scalar_select %p491, %s24, 1
        %s493 = smul.addr %s490, 2
        %s494 = sadd.s32 %s492, %s493
        %s495 = smul.addr %s494, 4
        %s496 = scalar_lea.vmem %s4, %s495
      $region56: #{bert_classifier_forward.14} parent=51 // pred_fallthru
        _
    $region52: #{bert_classifier_forward.14} parent=5 // pred_fallthru
      _
  $region6: #{bert_classifier_forward.14} parent=0 // loop_footer
    %s14 = sadd.s32 1, %s10
  $region7: #{bert_classifier_forward.14} parent=0 // loop_footer_branch
    %9 = sbr.rel target = $region3
  $region8: #{bert_classifier_forward.14} parent=0 // loop_exit
    _

// kernel: bert_classifier_forward.13
$region0: #{bert_classifier_forward.13}
  #allocation0 [shape = 'u32[]', space=smem, size = 0x4, offset = 0x4, fixed_abs, tag = 'smem constant byte address 0x4 - core index']
  #allocation1 [shape = 'u32[72,128]{1,0:T(1,128)}', space=vmem, size = 0x9000, scoped, tag = 'internal scratch']
  #allocation2 [shape = 'f32[16,96]{1,0:T(8,128)}', space=vmem, size = 0x2000, scoped, tag = 'scratch operand']
  %s0 = inlined_call_operand.vmem [shape: bf16[16,32], index: 0, kind: input, shape index: {}]
  %s1 = inlined_call_operand.vmem [shape: bf16[32,96], index: 1, kind: input, shape index: {}]
  %s2 = inlined_call_operand.vmem [shape: f32[1,96], index: 2, kind: input, shape index: {}]
  %s3 = inlined_call_operand.vmem [shape: bf16[16,96], index: 3, kind: output, shape index: {}]
  %s4 = sld [smem:[#allocation0]]
  $region30: #{bert_classifier_forward.13} parent=0
    _
  %s6 = ssub.s32 1, %s4
  %s7 = scalar_select 0, %s6, %s4
  // Predicated region
  $region2: #{bert_classifier_forward.13} parent=0 // pred_check
    _
  $region3: #{bert_classifier_forward.13} parent=0 // pred_check_branch
    %9 = sbr.rel (0) target = $region5
  $region4: #{bert_classifier_forward.13} parent=0 // pred_region
    _
  $region5: #{bert_classifier_forward.13} parent=0 // pred_fallthru
    _
  // Predicated region
  $region6: #{bert_classifier_forward.13} parent=0 // pred_check
    _
  $region7: #{bert_classifier_forward.13} parent=0 // pred_check_branch
    %11 = sbr.rel (0) target = $region9
  $region8: #{bert_classifier_forward.13} parent=0 // pred_region
    _
  $region9: #{bert_classifier_forward.13} parent=0 // pred_fallthru
    _
  // Predicated region
  $region10: #{bert_classifier_forward.13} parent=0 // pred_check
    _
  $region11: #{bert_classifier_forward.13} parent=0 // pred_check_branch
    %13 = sbr.rel (0) target = $region13
  $region12: #{bert_classifier_forward.13} parent=0 // pred_region
    _
  $region13: #{bert_classifier_forward.13} parent=0 // pred_fallthru
    _
  %p15 = scmp.eq.s32.totalorder 0, 0
  // Predicated region
  $region14: #{bert_classifier_forward.13} parent=0 // pred_check
    %p16 = pneg %p15
  $region15: #{bert_classifier_forward.13} parent=0 // pred_check_branch
    %18 = sbr.rel (%p16) target = $region17
  $region16: #{bert_classifier_forward.13} parent=0 // pred_region
    %vm19 = vcmask 785408
    %20 = vst.msk [vmem:[#allocation2] sm:$0xff] %vm19, 0.0
    %21 = vst.msk [vmem:[#allocation2 + $0x8] sm:$0xff] %vm19, 0.0
  $region17: #{bert_classifier_forward.13} parent=0 // pred_fallthru
    _
  %v22 = vld [vmem:[#allocation2] sm:$0xff]
  %v23 = vld [vmem:[#allocation2 + $0x8] sm:$0xff]
  %v24 = vld [vmem:[%s0] sm:$0xf]
  %v25 = vld [vmem:[%s0 + $0x4] sm:$0xf]
  %v26 = vld [vmem:[%s1] sm:$0xf]
  %v27 = vld [vmem:[%s1 + $0x4] sm:$0xf]
  %v28 = vld [vmem:[%s1 + $0x8] sm:$0xf]
  %v29 = vld [vmem:[%s1 + $0xc] sm:$0xf]
  %v32 = vunpack.c.l.b16 %v24
  %v33 = vunpack.c.l.b16 %v25
  %v34 = vpack.c.b16 %v33, %v32
  %v39 = vunpack.c.l.b16 %v26
  %v40 = vunpack.c.l.b16 %v27
  %v41 = vunpack.c.l.b16 %v28
  %v42 = vunpack.c.l.b16 %v29
  %v43 = vpack.c.b16 %v40, %v39
  %v44 = vpack.c.b16 %v42, %v41
  %vm47 = vcmask 261120
  %v49 = vsel %vm47, %v34, 0
  %51 = vmatpush.bf16.msra.mxu0 0
  %52 = vmatpush.bf16.msra.mxu0 0
  %53 = vmatpush.bf16.msra.mxu0 0
  %54 = vmatpush.bf16.msra.mxu0 0
  %55 = vmatpush.bf16.msra.mxu0 0
  %56 = vmatpush.bf16.msra.mxu0 0
  %57 = vmatpush.bf16.msra.mxu0 %v44
  %58 = vmatpush.bf16.msra.mxu0 %v43
  %59 = vmatmul.bf16.gmra.mxu0 %v49
  %v60 = vpop.f32.mrf.mxu0
  %v61 = vadd.f32 0.0, %v60
  %v62 = vpop.f32.mrf.mxu0
  %v63 = vadd.f32 0.0, %v62
  %64 = vdwg.mxu0
  %v65 = vadd.f32 %v22, %v61
  %v66 = vadd.f32 %v23, %v63
  %vm67 = vcmask 785408
  %68 = vst.msk [vmem:[#allocation2] sm:$0xff] %vm67, %v65
  %69 = vst.msk [vmem:[#allocation2 + $0x8] sm:$0xff] %vm67, %v66
  // Predicated region
  $region18: #{bert_classifier_forward.13} parent=0 // pred_check
    %p70 = pneg %p15
  $region19: #{bert_classifier_forward.13} parent=0 // pred_check_branch
    %72 = sbr.rel (%p70) target = $region21
  $region20: #{bert_classifier_forward.13} parent=0 // pred_region
    %v73 = vld [vmem:[#allocation2] sm:$0xff]
    %v74 = vld [vmem:[#allocation2 + $0x8] sm:$0xff]
    %v75 = vld [vmem:[%s2] sm:$0x1]
    %v77 = vperm.slane %v75, 0
    %v79 = vadd.f32 %v73, %v77
    %v80 = vadd.f32 %v74, %v77
    %v81 = vpack.c.bf16 %v79, %v79
    %v82 = vpack.c.bf16 %v80, %v80
    %vm83 = vcmask 781312
    %84 = vst.msk [vmem:[%s3] sm:$0xf] %vm83, %v81
    %85 = vst.msk [vmem:[%s3 + $0x4] sm:$0xf] %vm83, %v82
  $region21: #{bert_classifier_forward.13} parent=0 // pred_fallthru
    _
  // Predicated region
  $region22: #{bert_classifier_forward.13} parent=0 // pred_check
    _
  $region23: #{bert_classifier_forward.13} parent=0 // pred_check_branch
    %87 = sbr.rel (0) target = $region25
  $region24: #{bert_classifier_forward.13} parent=0 // pred_region
    _
  $region25: #{bert_classifier_forward.13} parent=0 // pred_fallthru
    _
  // Predicated region
  $region26: #{bert_classifier_forward.13} parent=0 // pred_check
    _
  $region27: #{bert_classifier_forward.13} parent=0 // pred_check_branch
    %89 = sbr.rel (0) target = $region29
  $region28: #{bert_classifier_forward.13} parent=0 // pred_region
    _
  $region29: #{bert_classifier_forward.13} parent=0 // pred_fallthru
    _

// kernel: bert_classifier_forward.12
$region0: #{bert_classifier_forward.12}
  #allocation0 [shape = 'u32[]', space=smem, size = 0x4, offset = 0x4, fixed_abs, tag = 'smem constant byte address 0x4 - core index']
  #allocation1 [shape = 'u32[72,128]{1,0:T(1,128)}', space=vmem, size = 0x9000, scoped, tag = 'internal scratch']
  %s0 = inlined_call_operand.vmem [shape: f32[16,32], index: 0, kind: input, shape index: {}]
  %s1 = inlined_call_operand.vmem [shape: f32[1,32], index: 1, kind: input, shape index: {}]
  %s2 = inlined_call_operand.vmem [shape: f32[1,32], index: 2, kind: input, shape index: {}]
  %s3 = inlined_call_operand.vmem [shape: bf16[16,32], index: 3, kind: output, shape index: {}]
  %s4 = sld [smem:[#allocation0]]
  $region22: #{bert_classifier_forward.12} parent=0
    _
  %s6 = ssub.s32 1, %s4
  %s7 = scalar_select 0, %s6, %s4
  // Predicated region
  $region2: #{bert_classifier_forward.12} parent=0 // pred_check
    _
  $region3: #{bert_classifier_forward.12} parent=0 // pred_check_branch
    %9 = sbr.rel (0) target = $region5
  $region4: #{bert_classifier_forward.12} parent=0 // pred_region
    _
  $region5: #{bert_classifier_forward.12} parent=0 // pred_fallthru
    _
  // Predicated region
  $region6: #{bert_classifier_forward.12} parent=0 // pred_check
    _
  $region7: #{bert_classifier_forward.12} parent=0 // pred_check_branch
    %11 = sbr.rel (0) target = $region9
  $region8: #{bert_classifier_forward.12} parent=0 // pred_region
    _
  $region9: #{bert_classifier_forward.12} parent=0 // pred_fallthru
    _
  // Predicated region
  $region10: #{bert_classifier_forward.12} parent=0 // pred_check
    _
  $region11: #{bert_classifier_forward.12} parent=0 // pred_check_branch
    %13 = sbr.rel (0) target = $region13
  $region12: #{bert_classifier_forward.12} parent=0 // pred_region
    _
  $region13: #{bert_classifier_forward.12} parent=0 // pred_fallthru
    _
  %v14 = vld [vmem:[%s0] sm:$0xff]
  %v15 = vld [vmem:[%s0 + $0x8] sm:$0xff]
  %vm16 = vcmask 261120
  %v17 = vsel %vm16, %v14, 0.0
  %18 = vadd.xlane.f32.xlu0 %v17
  %v19 = vpop.xlane.xlu0 %18
  %v20 = vsel %vm16, %v15, 0.0
  %21 = vadd.xlane.f32.xlu0 %v20
  %v22 = vpop.xlane.xlu0 %21
  %v23 = vrcp.pop 32.0
  %v24 = vmul.f32 32.0, %v23
  %v25 = vsub.f32 1.0, %v24
  %v26 = vmul.f32 %v23, %v25
  %v27 = vadd.f32 %v23, %v26
  %vm28 = vweird.f32 %v23
  %v29 = vsel %vm28, %v23, %v27
  %v30 = vmul.f32 %v19, %v29
  %v31 = vmul.f32 %v22, %v29
  %v32 = vsub.f32 %v14, %v30
  %v33 = vsub.f32 %v15, %v31
  %v34 = vmul.f32 %v32, %v32
  %v35 = vmul.f32 %v33, %v33
  %v36 = vsel %vm16, %v34, 0.0
  %37 = vadd.xlane.f32.xlu0 %v36
  %v38 = vpop.xlane.xlu0 %37
  %v39 = vsel %vm16, %v35, 0.0
  %40 = vadd.xlane.f32.xlu0 %v39
  %v41 = vpop.xlane.xlu0 %40
  %v42 = vmul.f32 %v38, %v29
  %v43 = vmul.f32 %v41, %v29
  %v44 = vadd.f32 %v42, 1e-12
  %v45 = vadd.f32 %v43, 1e-12
  %v46 = vrsqrt.pop %v44
  %v47 = vmul.f32 %v46, %v44
  %v48 = vmul.f32 %v47, %v46
  %v49 = vmul.f32 0.5, %v48
  %v50 = vsub.f32 1.5, %v49
  %v51 = vmul.f32 %v46, %v50
  %vm52 = vweird.f32 %v44
  %vm53 = vweird.f32 %v46
  %vm54 = vmor %vm52, %vm53
  %v55 = vsel %vm54, %v46, %v51
  %v56 = vrsqrt.pop %v45
  %v57 = vmul.f32 %v56, %v45
  %v58 = vmul.f32 %v57, %v56
  %v59 = vmul.f32 0.5, %v58
  %v60 = vsub.f32 1.5, %v59
  %v61 = vmul.f32 %v56, %v60
  %vm62 = vweird.f32 %v45
  %vm63 = vweird.f32 %v56
  %vm64 = vmor %vm62, %vm63
  %v65 = vsel %vm64, %v56, %v61
  %v66 = vmul.f32 %v32, %v55
  %v67 = vmul.f32 %v33, %v65
  %v68 = vld [vmem:[%s1] sm:$0x1]
  %v70 = vperm.slane %v68, 0
  %v72 = vmul.f32 %v66, %v70
  %v73 = vmul.f32 %v67, %v70
  %v74 = vld [vmem:[%s2] sm:$0x1]
  %v76 = vperm.slane %v74, 0
  %v78 = vadd.f32 %v72, %v76
  %v79 = vadd.f32 %v73, %v76
  %v80 = vpack.c.bf16 %v78, %v78
  %v81 = vpack.c.bf16 %v79, %v79
  %vm82 = vcmask 257024
  %83 = vst.msk [vmem:[%s3] sm:$0xf] %vm82, %v80
  %84 = vst.msk [vmem:[%s3 + $0x4] sm:$0xf] %vm82, %v81
  // Predicated region
  $region14: #{bert_classifier_forward.12} parent=0 // pred_check
    _
  $region15: #{bert_classifier_forward.12} parent=0 // pred_check_branch
    %86 = sbr.rel (0) target = $region17
  $region16: #{bert_classifier_forward.12} parent=0 // pred_region
    _
  $region17: #{bert_classifier_forward.12} parent=0 // pred_fallthru
    _
  // Predicated region
  $region18: #{bert_classifier_forward.12} parent=0 // pred_check
    _
  $region19: #{bert_classifier_forward.12} parent=0 // pred_check_branch
    %88 = sbr.rel (0) target = $region21
  $region20: #{bert_classifier_forward.12} parent=0 // pred_region
    _
  $region21: #{bert_classifier_forward.12} parent=0 // pred_fallthru
    _

// kernel: bert_classifier_forward.16
$region0: #{bert_classifier_forward.16}
  #allocation0 [shape = 'u32[]', space=smem, size = 0x4, offset = 0x4, fixed_abs, tag = 'smem constant byte address 0x4 - core index']
  #allocation1 [shape = 'u32[72,128]{1,0:T(1,128)}', space=vmem, size = 0x9000, scoped, tag = 'internal scratch']
  #allocation2 [shape = 'f32[16,64]{1,0:T(8,128)}', space=vmem, size = 0x2000, scoped, tag = 'scratch operand']
  %s0 = inlined_call_operand.vmem [shape: bf16[16,32], index: 0, kind: input, shape index: {}]
  %s1 = inlined_call_operand.vmem [shape: bf16[32,64], index: 1, kind: input, shape index: {}]
  %s2 = inlined_call_operand.vmem [shape: f32[1,64], index: 2, kind: input, shape index: {}]
  %s3 = inlined_call_operand.vmem [shape: bf16[16,64], index: 3, kind: output, shape index: {}]
  %s4 = sld [smem:[#allocation0]]
  $region30: #{bert_classifier_forward.16} parent=0
    _
  %s6 = ssub.s32 1, %s4
  %s7 = scalar_select 0, %s6, %s4
  // Predicated region
  $region2: #{bert_classifier_forward.16} parent=0 // pred_check
    _
  $region3: #{bert_classifier_forward.16} parent=0 // pred_check_branch
    %9 = sbr.rel (0) target = $region5
  $region4: #{bert_classifier_forward.16} parent=0 // pred_region
    _
  $region5: #{bert_classifier_forward.16} parent=0 // pred_fallthru
    _
  // Predicated region
  $region6: #{bert_classifier_forward.16} parent=0 // pred_check
    _
  $region7: #{bert_classifier_forward.16} parent=0 // pred_check_branch
    %11 = sbr.rel (0) target = $region9
  $region8: #{bert_classifier_forward.16} parent=0 // pred_region
    _
  $region9: #{bert_classifier_forward.16} parent=0 // pred_fallthru
    _
  // Predicated region
  $region10: #{bert_classifier_forward.16} parent=0 // pred_check
    _
  $region11: #{bert_classifier_forward.16} parent=0 // pred_check_branch
    %13 = sbr.rel (0) target = $region13
  $region12: #{bert_classifier_forward.16} parent=0 // pred_region
    _
  $region13: #{bert_classifier_forward.16} parent=0 // pred_fallthru
    _
  %p15 = scmp.eq.s32.totalorder 0, 0
  // Predicated region
  $region14: #{bert_classifier_forward.16} parent=0 // pred_check
    %p16 = pneg %p15
  $region15: #{bert_classifier_forward.16} parent=0 // pred_check_branch
    %18 = sbr.rel (%p16) target = $region17
  $region16: #{bert_classifier_forward.16} parent=0 // pred_region
    %vm19 = vcmask 523264
    %20 = vst.msk [vmem:[#allocation2] sm:$0xff] %vm19, 0.0
    %21 = vst.msk [vmem:[#allocation2 + $0x8] sm:$0xff] %vm19, 0.0
  $region17: #{bert_classifier_forward.16} parent=0 // pred_fallthru
    _
  %v22 = vld [vmem:[#allocation2] sm:$0xff]
  %v23 = vld [vmem:[#allocation2 + $0x8] sm:$0xff]
  %v24 = vld [vmem:[%s0] sm:$0xf]
  %v25 = vld [vmem:[%s0 + $0x4] sm:$0xf]
  %v26 = vld [vmem:[%s1] sm:$0xf]
  %v27 = vld [vmem:[%s1 + $0x4] sm:$0xf]
  %v28 = vld [vmem:[%s1 + $0x8] sm:$0xf]
  %v29 = vld [vmem:[%s1 + $0xc] sm:$0xf]
  %v32 = vunpack.c.l.b16 %v24
  %v33 = vunpack.c.l.b16 %v25
  %v34 = vpack.c.b16 %v33, %v32
  %v39 = vunpack.c.l.b16 %v26
  %v40 = vunpack.c.l.b16 %v27
  %v41 = vunpack.c.l.b16 %v28
  %v42 = vunpack.c.l.b16 %v29
  %v43 = vpack.c.b16 %v40, %v39
  %v44 = vpack.c.b16 %v42, %v41
  %vm47 = vcmask 261120
  %v49 = vsel %vm47, %v34, 0
  %51 = vmatpush.bf16.msra.mxu0 0
  %52 = vmatpush.bf16.msra.mxu0 0
  %53 = vmatpush.bf16.msra.mxu0 0
  %54 = vmatpush.bf16.msra.mxu0 0
  %55 = vmatpush.bf16.msra.mxu0 0
  %56 = vmatpush.bf16.msra.mxu0 0
  %57 = vmatpush.bf16.msra.mxu0 %v44
  %58 = vmatpush.bf16.msra.mxu0 %v43
  %59 = vmatmul.bf16.gmra.mxu0 %v49
  %v60 = vpop.f32.mrf.mxu0
  %v61 = vadd.f32 0.0, %v60
  %v62 = vpop.f32.mrf.mxu0
  %v63 = vadd.f32 0.0, %v62
  %64 = vdwg.mxu0
  %v65 = vadd.f32 %v22, %v61
  %v66 = vadd.f32 %v23, %v63
  %vm67 = vcmask 523264
  %68 = vst.msk [vmem:[#allocation2] sm:$0xff] %vm67, %v65
  %69 = vst.msk [vmem:[#allocation2 + $0x8] sm:$0xff] %vm67, %v66
  // Predicated region
  $region18: #{bert_classifier_forward.16} parent=0 // pred_check
    %p70 = pneg %p15
  $region19: #{bert_classifier_forward.16} parent=0 // pred_check_branch
    %72 = sbr.rel (%p70) target = $region21
  $region20: #{bert_classifier_forward.16} parent=0 // pred_region
    %v73 = vld [vmem:[#allocation2] sm:$0xff]
    %v74 = vld [vmem:[#allocation2 + $0x8] sm:$0xff]
    %v75 = vld [vmem:[%s2] sm:$0x1]
    %v77 = vperm.slane %v75, 0
    %v79 = vadd.f32 %v73, %v77
    %v80 = vadd.f32 %v74, %v77
    %v81 = vmul.f32 %v79, 0.5
    %v82 = vmul.f32 %v80, 0.5
    %v83 = vmul.f32 %v79, 0.70710677
    %v84 = vmul.f32 %v80, 0.70710677
    %v85 = vmul.f32 %v83, %v83
    %v86 = vmin.f32 16.0, %v85
    %v87 = vmul.f32 %v86, 2.1237322e-06
    %v88 = vadd.f32 %v87, 0.00028619796
    %v89 = vmul.f32 %v86, %v88
    %v90 = vadd.f32 %v89, 0.0036580483
    %v91 = vmul.f32 %v86, %v90
    %v92 = vadd.f32 %v91, 0.05243302
    %v93 = vmul.f32 %v86, %v92
    %v94 = vadd.f32 %v93, 0.18741608
    %v95 = vmul.f32 %v86, %v94
    %v96 = vadd.f32 %v95, 1.1283791
    %v97 = vmul.f32 %v83, %v96
    %v98 = vmul.f32 %v86, 3.8918573e-05
    %v99 = vadd.f32 %v98, 0.001143296
    %v100 = vmul.f32 %v86, %v99
    %v101 = vadd.f32 %v100, 0.014752088
    %v102 = vmul.f32 %v86, %v101
    %v103 = vadd.f32 %v102, 0.112945676
    %v104 = vmul.f32 %v86, %v103
    %v105 = vadd.f32 %v104, 0.4994258
    %v106 = vmul.f32 %v86, %v105
    %v107 = vadd.f32 %v106, 1.0
    %v108 = vrcp.pop %v107
    %v109 = vmul.f32 %v107, %v108
    %v110 = vsub.f32 1.0, %v109
    %v111 = vmul.f32 %v108, %v110
    %v112 = vadd.f32 %v108, %v111
    %vm113 = vweird.f32 %v107
    %vm114 = vweird.f32 %v108
    %vm115 = vmor %vm113, %vm114
    %v116 = vsel %vm115, %v108, %v112
    %v117 = vand.u32 2147483647, %v107
    %vm118 = vcmp.eq.f32.partialorder %v117, 8.507059e+37
    %v119 = vand.u32 %v107, 2147483648
    %v120 = vor.u32 1.1754944e-38, %v119
    %v121 = vsel %vm118, %v120, %v116
    %v122 = vmul.f32 %v97, %v121
    %v123 = vmin.f32 %v122, 1.0
    %v124 = vmax.f32 %v123, -1.0
    %v125 = vmul.f32 %v84, %v84
    %v126 = vmin.f32 16.0, %v125
    %v127 = vmul.f32 %v126, 2.1237322e-06
    %v128 = vadd.f32 %v127, 0.00028619796
    %v129 = vmul.f32 %v126, %v128
    %v130 = vadd.f32 %v129, 0.0036580483
    %v131 = vmul.f32 %v126, %v130
    %v132 = vadd.f32 %v131, 0.05243302
    %v133 = vmul.f32 %v126, %v132
    %v134 = vadd.f32 %v133, 0.18741608
    %v135 = vmul.f32 %v126, %v134
    %v136 = vadd.f32 %v135, 1.1283791
    %v137 = vmul.f32 %v84, %v136
    %v138 = vmul.f32 %v126, 3.8918573e-05
    %v139 = vadd.f32 %v138, 0.001143296
    %v140 = vmul.f32 %v126, %v139
    %v141 = vadd.f32 %v140, 0.014752088
    %v142 = vmul.f32 %v126, %v141
    %v143 = vadd.f32 %v142, 0.112945676
    %v144 = vmul.f32 %v126, %v143
    %v145 = vadd.f32 %v144, 0.4994258
    %v146 = vmul.f32 %v126, %v145
    %v147 = vadd.f32 %v146, 1.0
    %v148 = vrcp.pop %v147
    %v149 = vmul.f32 %v147, %v148
    %v150 = vsub.f32 1.0, %v149
    %v151 = vmul.f32 %v148, %v150
    %v152 = vadd.f32 %v148, %v151
    %vm153 = vweird.f32 %v147
    %vm154 = vweird.f32 %v148
    %vm155 = vmor %vm153, %vm154
    %v156 = vsel %vm155, %v148, %v152
    %v157 = vand.u32 2147483647, %v147
    %vm158 = vcmp.eq.f32.partialorder %v157, 8.507059e+37
    %v159 = vand.u32 %v147, 2147483648
    %v160 = vor.u32 1.1754944e-38, %v159
    %v161 = vsel %vm158, %v160, %v156
    %v162 = vmul.f32 %v137, %v161
    %v163 = vmin.f32 %v162, 1.0
    %v164 = vmax.f32 %v163, -1.0
    %v165 = vadd.f32 %v124, 1.0
    %v166 = vadd.f32 %v164, 1.0
    %v167 = vmul.f32 %v81, %v165
    %v168 = vmul.f32 %v82, %v166
    %v169 = vpack.c.bf16 %v167, %v167
    %v170 = vpack.c.bf16 %v168, %v168
    %vm171 = vcmask 519168
    %172 = vst.msk [vmem:[%s3] sm:$0xf] %vm171, %v169
    %173 = vst.msk [vmem:[%s3 + $0x4] sm:$0xf] %vm171, %v170
  $region21: #{bert_classifier_forward.16} parent=0 // pred_fallthru
    _
  // Predicated region
  $region22: #{bert_classifier_forward.16} parent=0 // pred_check
    _
  $region23: #{bert_classifier_forward.16} parent=0 // pred_check_branch
    %175 = sbr.rel (0) target = $region25
  $region24: #{bert_classifier_forward.16} parent=0 // pred_region
    _
  $region25: #{bert_classifier_forward.16} parent=0 // pred_fallthru
    _
  // Predicated region
  $region26: #{bert_classifier_forward.16} parent=0 // pred_check
    _
  $region27: #{bert_classifier_forward.16} parent=0 // pred_check_branch
    %177 = sbr.rel (0) target = $region29
  $region28: #{bert_classifier_forward.16} parent=0 // pred_region
    _
  $region29: #{bert_classifier_forward.16} parent=0 // pred_fallthru
    _

// kernel: bert_classifier_forward.17
$region0: #{bert_classifier_forward.17}
  #allocation0 [shape = 'u32[]', space=smem, size = 0x4, offset = 0x4, fixed_abs, tag = 'smem constant byte address 0x4 - core index']
  #allocation1 [shape = 'u32[72,128]{1,0:T(1,128)}', space=vmem, size = 0x9000, scoped, tag = 'internal scratch']
  #allocation2 [shape = 'f32[16,32]{1,0:T(8,128)}', space=vmem, size = 0x2000, scoped, tag = 'scratch operand']
  %s0 = inlined_call_operand.vmem [shape: bf16[16,64], index: 0, kind: input, shape index: {}]
  %s1 = inlined_call_operand.vmem [shape: bf16[64,32], index: 1, kind: input, shape index: {}]
  %s2 = inlined_call_operand.vmem [shape: f32[1,32], index: 2, kind: input, shape index: {}]
  %s3 = inlined_call_operand.vmem [shape: bf16[16,32], index: 3, kind: input, shape index: {}]
  %s4 = inlined_call_operand.vmem [shape: f32[1,32], index: 4, kind: input, shape index: {}]
  %s5 = inlined_call_operand.vmem [shape: f32[1,32], index: 5, kind: input, shape index: {}]
  %s6 = inlined_call_operand.vmem [shape: bf16[16,32], index: 6, kind: output, shape index: {}]
  %s7 = sld [smem:[#allocation0]]
  $region42: #{bert_classifier_forward.17} parent=0
    _
  %s9 = ssub.s32 1, %s7
  %s10 = scalar_select 0, %s9, %s7
  // Predicated region
  $region2: #{bert_classifier_forward.17} parent=0 // pred_check
    _
  $region3: #{bert_classifier_forward.17} parent=0 // pred_check_branch
    %12 = sbr.rel (0) target = $region5
  $region4: #{bert_classifier_forward.17} parent=0 // pred_region
    _
  $region5: #{bert_classifier_forward.17} parent=0 // pred_fallthru
    _
  // Predicated region
  $region6: #{bert_classifier_forward.17} parent=0 // pred_check
    _
  $region7: #{bert_classifier_forward.17} parent=0 // pred_check_branch
    %14 = sbr.rel (0) target = $region9
  $region8: #{bert_classifier_forward.17} parent=0 // pred_region
    _
  $region9: #{bert_classifier_forward.17} parent=0 // pred_fallthru
    _
  // Predicated region
  $region10: #{bert_classifier_forward.17} parent=0 // pred_check
    _
  $region11: #{bert_classifier_forward.17} parent=0 // pred_check_branch
    %16 = sbr.rel (0) target = $region13
  $region12: #{bert_classifier_forward.17} parent=0 // pred_region
    _
  $region13: #{bert_classifier_forward.17} parent=0 // pred_fallthru
    _
  // Predicated region
  $region14: #{bert_classifier_forward.17} parent=0 // pred_check
    _
  $region15: #{bert_classifier_forward.17} parent=0 // pred_check_branch
    %18 = sbr.rel (0) target = $region17
  $region16: #{bert_classifier_forward.17} parent=0 // pred_region
    _
  $region17: #{bert_classifier_forward.17} parent=0 // pred_fallthru
    _
  // Predicated region
  $region18: #{bert_classifier_forward.17} parent=0 // pred_check
    _
  $region19: #{bert_classifier_forward.17} parent=0 // pred_check_branch
    %20 = sbr.rel (0) target = $region21
  $region20: #{bert_classifier_forward.17} parent=0 // pred_region
    _
  $region21: #{bert_classifier_forward.17} parent=0 // pred_fallthru
    _
  // Predicated region
  $region22: #{bert_classifier_forward.17} parent=0 // pred_check
    _
  $region23: #{bert_classifier_forward.17} parent=0 // pred_check_branch
    %22 = sbr.rel (0) target = $region25
  $region24: #{bert_classifier_forward.17} parent=0 // pred_region
    _
  $region25: #{bert_classifier_forward.17} parent=0 // pred_fallthru
    _
  %p24 = scmp.eq.s32.totalorder 0, 0
  // Predicated region
  $region26: #{bert_classifier_forward.17} parent=0 // pred_check
    %p25 = pneg %p24
  $region27: #{bert_classifier_forward.17} parent=0 // pred_check_branch
    %27 = sbr.rel (%p25) target = $region29
  $region28: #{bert_classifier_forward.17} parent=0 // pred_region
    %vm28 = vcmask 261120
    %29 = vst.msk [vmem:[#allocation2] sm:$0xff] %vm28, 0.0
    %30 = vst.msk [vmem:[#allocation2 + $0x8] sm:$0xff] %vm28, 0.0
  $region29: #{bert_classifier_forward.17} parent=0 // pred_fallthru
    _
  %v31 = vld [vmem:[#allocation2] sm:$0xff]
  %v32 = vld [vmem:[#allocation2 + $0x8] sm:$0xff]
  %v33 = vld [vmem:[%s0] sm:$0xf]
  %v34 = vld [vmem:[%s0 + $0x4] sm:$0xf]
  %v35 = vld [vmem:[%s1] sm:$0xf]
  %v36 = vld [vmem:[%s1 + $0x4] sm:$0xf]
  %v37 = vld [vmem:[%s1 + $0x8] sm:$0xf]
  %v38 = vld [vmem:[%s1 + $0xc] sm:$0xf]
  %v39 = vld [vmem:[%s1 + $0x10] sm:$0xf]
  %v40 = vld [vmem:[%s1 + $0x14] sm:$0xf]
  %v41 = vld [vmem:[%s1 + $0x18] sm:$0xf]
  %v42 = vld [vmem:[%s1 + $0x1c] sm:$0xf]
  %v45 = vunpack.c.l.b16 %v33
  %v46 = vunpack.c.l.b16 %v34
  %v47 = vpack.c.b16 %v46, %v45
  %v56 = vunpack.c.l.b16 %v35
  %v57 = vunpack.c.l.b16 %v36
  %v58 = vunpack.c.l.b16 %v37
  %v59 = vunpack.c.l.b16 %v38
  %v60 = vunpack.c.l.b16 %v39
  %v61 = vunpack.c.l.b16 %v40
  %v62 = vunpack.c.l.b16 %v41
  %v63 = vunpack.c.l.b16 %v42
  %v64 = vpack.c.b16 %v57, %v56
  %v65 = vpack.c.b16 %v59, %v58
  %v66 = vpack.c.b16 %v61, %v60
  %v67 = vpack.c.b16 %v63, %v62
  %vm72 = vcmask 523264
  %v74 = vsel %vm72, %v47, 0
  %76 = vmatpush.bf16.msra.mxu0 0
  %77 = vmatpush.bf16.msra.mxu0 0
  %78 = vmatpush.bf16.msra.mxu0 0
  %79 = vmatpush.bf16.msra.mxu0 0
  %80 = vmatpush.bf16.msra.mxu0 %v67
  %81 = vmatpush.bf16.msra.mxu0 %v66
  %82 = vmatpush.bf16.msra.mxu0 %v65
  %83 = vmatpush.bf16.msra.mxu0 %v64
  %84 = vmatmul.bf16.gmra.mxu0 %v74
  %v85 = vpop.f32.mrf.mxu0
  %v86 = vadd.f32 0.0, %v85
  %v87 = vpop.f32.mrf.mxu0
  %v88 = vadd.f32 0.0, %v87
  %89 = vdwg.mxu0
  %v90 = vadd.f32 %v31, %v86
  %v91 = vadd.f32 %v32, %v88
  %vm92 = vcmask 261120
  %93 = vst.msk [vmem:[#allocation2] sm:$0xff] %vm92, %v90
  %94 = vst.msk [vmem:[#allocation2 + $0x8] sm:$0xff] %vm92, %v91
  // Predicated region
  $region30: #{bert_classifier_forward.17} parent=0 // pred_check
    %p95 = pneg %p24
  $region31: #{bert_classifier_forward.17} parent=0 // pred_check_branch
    %97 = sbr.rel (%p95) target = $region33
  $region32: #{bert_classifier_forward.17} parent=0 // pred_region
    %v98 = vld [vmem:[#allocation2] sm:$0xff]
    %v99 = vld [vmem:[#allocation2 + $0x8] sm:$0xff]
    %v100 = vld [vmem:[%s2] sm:$0x1]
    %v102 = vperm.slane %v100, 0
    %v104 = vadd.f32 %v98, %v102
    %v105 = vadd.f32 %v99, %v102
    %v106 = vld [vmem:[%s3] sm:$0xf]
    %v107 = vld [vmem:[%s3 + $0x4] sm:$0xf]
    %v108 = vunpack.c.l.bf16 %v106
    %v109 = vunpack.c.l.bf16 %v107
    %v110 = vadd.f32 %v104, %v108
    %v111 = vadd.f32 %v105, %v109
    %v112 = vsel %vm92, %v110, 0.0
    %113 = vadd.xlane.f32.xlu0 %v112
    %v114 = vpop.xlane.xlu0 %113
    %v115 = vsel %vm92, %v111, 0.0
    %116 = vadd.xlane.f32.xlu0 %v115
    %v117 = vpop.xlane.xlu0 %116
    %v118 = vrcp.pop 32.0
    %v119 = vmul.f32 32.0, %v118
    %v120 = vsub.f32 1.0, %v119
    %v121 = vmul.f32 %v118, %v120
    %v122 = vadd.f32 %v118, %v121
    %vm123 = vweird.f32 %v118
    %v124 = vsel %vm123, %v118, %v122
    %v125 = vmul.f32 %v114, %v124
    %v126 = vmul.f32 %v117, %v124
    %v127 = vsub.f32 %v110, %v125
    %v128 = vsub.f32 %v111, %v126
    %v129 = vmul.f32 %v127, %v127
    %v130 = vmul.f32 %v128, %v128
    %v131 = vsel %vm92, %v129, 0.0
    %132 = vadd.xlane.f32.xlu0 %v131
    %v133 = vpop.xlane.xlu0 %132
    %v134 = vsel %vm92, %v130, 0.0
    %135 = vadd.xlane.f32.xlu0 %v134
    %v136 = vpop.xlane.xlu0 %135
    %v137 = vmul.f32 %v133, %v124
    %v138 = vmul.f32 %v136, %v124
    %v139 = vadd.f32 %v137, 1e-12
    %v140 = vadd.f32 %v138, 1e-12
    %v141 = vrsqrt.pop %v139
    %v142 = vmul.f32 %v141, %v139
    %v143 = vmul.f32 %v142, %v141
    %v144 = vmul.f32 0.5, %v143
    %v145 = vsub.f32 1.5, %v144
    %v146 = vmul.f32 %v141, %v145
    %vm147 = vweird.f32 %v139
    %vm148 = vweird.f32 %v141
    %vm149 = vmor %vm147, %vm148
    %v150 = vsel %vm149, %v141, %v146
    %v151 = vrsqrt.pop %v140
    %v152 = vmul.f32 %v151, %v140
    %v153 = vmul.f32 %v152, %v151
    %v154 = vmul.f32 0.5, %v153
    %v155 = vsub.f32 1.5, %v154
    %v156 = vmul.f32 %v151, %v155
    %vm157 = vweird.f32 %v140
    %vm158 = vweird.f32 %v151
    %vm159 = vmor %vm157, %vm158
    %v160 = vsel %vm159, %v151, %v156
    %v161 = vmul.f32 %v127, %v150
    %v162 = vmul.f32 %v128, %v160
    %v163 = vld [vmem:[%s4] sm:$0x1]
    %v165 = vperm.slane %v163, 0
    %v167 = vmul.f32 %v161, %v165
    %v168 = vmul.f32 %v162, %v165
    %v169 = vld [vmem:[%s5] sm:$0x1]
    %v171 = vperm.slane %v169, 0
    %v173 = vadd.f32 %v167, %v171
    %v174 = vadd.f32 %v168, %v171
    %v175 = vpack.c.bf16 %v173, %v173
    %v176 = vpack.c.bf16 %v174, %v174
    %vm177 = vcmask 257024
    %178 = vst.msk [vmem:[%s6] sm:$0xf] %vm177, %v175
    %179 = vst.msk [vmem:[%s6 + $0x4] sm:$0xf] %vm177, %v176
  $region33: #{bert_classifier_forward.17} parent=0 // pred_fallthru
    _
  // Predicated region
  $region34: #{bert_classifier_forward.17} parent=0 // pred_check
    _
  $region35: #{bert_classifier_forward.17} parent=0 // pred_check_branch
    %181 = sbr.rel (0) target = $region37
  $region36: #{bert_classifier_forward.17} parent=0 // pred_region
    _
  $region37: #{bert_classifier_forward.17} parent=0 // pred_fallthru
    _
  // Predicated region
  $region38: #{bert_classifier_forward.17} parent=0 // pred_check
    _
  $region39: #{bert_classifier_forward.17} parent=0 // pred_check_branch
    %183 = sbr.rel (0) target = $region41
  $region40: #{bert_classifier_forward.17} parent=0 // pred_region
    _
  $region41: #{bert_classifier_forward.17} parent=0 // pred_fallthru
    _

// kernel: bert_classifier_forward.23
$region0: #{bert_classifier_forward.23}
  #allocation0 [shape = 'u32[]', space=smem, size = 0x4, offset = 0x4, fixed_abs, tag = 'smem constant byte address 0x4 - core index']
  #allocation1 [shape = 'u32[72,128]{1,0:T(1,128)}', space=vmem, size = 0x9000, scoped, tag = 'internal scratch']
  %s0 = inlined_call_operand.vmem [shape: bf16[8,32], index: 0, kind: input, shape index: {}]
  %s1 = inlined_call_operand.vmem [shape: f32[32,32], index: 1, kind: input, shape index: {}]
  %s2 = inlined_call_operand.vmem [shape: f32[1,32], index: 2, kind: input, shape index: {}]
  %s3 = inlined_call_operand.vmem [shape: f32[32,3], index: 3, kind: input, shape index: {}]
  %s4 = inlined_call_operand.vmem [shape: f32[1,3], index: 4, kind: input, shape index: {}]
  %s5 = inlined_call_operand.vmem [shape: f32[8,3], index: 5, kind: output, shape index: {}]
  %s6 = sld [smem:[#allocation0]]
  $region30: #{bert_classifier_forward.23} parent=0
    _
  %s8 = ssub.s32 1, %s6
  %s9 = scalar_select 0, %s8, %s6
  // Predicated region
  $region2: #{bert_classifier_forward.23} parent=0 // pred_check
    _
  $region3: #{bert_classifier_forward.23} parent=0 // pred_check_branch
    %11 = sbr.rel (0) target = $region5
  $region4: #{bert_classifier_forward.23} parent=0 // pred_region
    _
  $region5: #{bert_classifier_forward.23} parent=0 // pred_fallthru
    _
  // Predicated region
  $region6: #{bert_classifier_forward.23} parent=0 // pred_check
    _
  $region7: #{bert_classifier_forward.23} parent=0 // pred_check_branch
    %13 = sbr.rel (0) target = $region9
  $region8: #{bert_classifier_forward.23} parent=0 // pred_region
    _
  $region9: #{bert_classifier_forward.23} parent=0 // pred_fallthru
    _
  // Predicated region
  $region10: #{bert_classifier_forward.23} parent=0 // pred_check
    _
  $region11: #{bert_classifier_forward.23} parent=0 // pred_check_branch
    %15 = sbr.rel (0) target = $region13
  $region12: #{bert_classifier_forward.23} parent=0 // pred_region
    _
  $region13: #{bert_classifier_forward.23} parent=0 // pred_fallthru
    _
  // Predicated region
  $region14: #{bert_classifier_forward.23} parent=0 // pred_check
    _
  $region15: #{bert_classifier_forward.23} parent=0 // pred_check_branch
    %17 = sbr.rel (0) target = $region17
  $region16: #{bert_classifier_forward.23} parent=0 // pred_region
    _
  $region17: #{bert_classifier_forward.23} parent=0 // pred_fallthru
    _
  // Predicated region
  $region18: #{bert_classifier_forward.23} parent=0 // pred_check
    _
  $region19: #{bert_classifier_forward.23} parent=0 // pred_check_branch
    %19 = sbr.rel (0) target = $region21
  $region20: #{bert_classifier_forward.23} parent=0 // pred_region
    _
  $region21: #{bert_classifier_forward.23} parent=0 // pred_fallthru
    _
  %v20 = vld [vmem:[%s0] sm:$0xf]
  %v21 = vunpack.c.l.bf16 %v20
  %v22 = vld [vmem:[%s1] sm:$0xff]
  %v23 = vld [vmem:[%s1 + $0x8] sm:$0xff]
  %v24 = vld [vmem:[%s1 + $0x10] sm:$0xff]
  %v25 = vld [vmem:[%s1 + $0x18] sm:$0xff]
  %v26 = vld [vmem:[%s2] sm:$0x1]
  %v28 = vperm.slane %v26, 0
  %vm30 = vcmask 261120
  %v32 = vsel %vm30, %v21, 0
  %34 = vmatpush.msra.mxu0 0.0
  %35 = vmatpush.msra.mxu0 0.0
  %36 = vmatpush.msra.mxu0 0.0
  %37 = vmatpush.msra.mxu0 0.0
  %38 = vmatpush.msra.mxu0 0.0
  %39 = vmatpush.msra.mxu0 0.0
  %40 = vmatpush.msra.mxu0 0.0
  %41 = vmatpush.msra.mxu0 0.0
  %42 = vmatpush.msra.mxu0 0.0
  %43 = vmatpush.msra.mxu0 0.0
  %44 = vmatpush.msra.mxu0 0.0
  %45 = vmatpush.msra.mxu0 0.0
  %46 = vmatpush.msra.mxu0 %v25
  %47 = vmatpush.msra.mxu0 %v24
  %48 = vmatpush.msra.mxu0 %v23
  %49 = vmatpush.msra.mxu0 %v22
  %50 = vmatmul.f32.gmra.mxu0 %v32
  %v51 = vpop.f32.mrf.mxu0
  %v52 = vadd.f32 %v28, %v51
  %53 = vdwg.mxu0
  %v54 = vtanh.pop %v52
  %v55 = vld [vmem:[%s3] sm:$0xff]
  %v56 = vld [vmem:[%s3 + $0x8] sm:$0xff]
  %v57 = vld [vmem:[%s3 + $0x10] sm:$0xff]
  %v58 = vld [vmem:[%s3 + $0x18] sm:$0xff]
  %v59 = vld [vmem:[%s4] sm:$0x1]
  %v61 = vperm.slane %v59, 0
  %v64 = vsel %vm30, %v54, 0
  %66 = vmatpush.msra.mxu0 0.0
  %67 = vmatpush.msra.mxu0 0.0
  %68 = vmatpush.msra.mxu0 0.0
  %69 = vmatpush.msra.mxu0 0.0
  %70 = vmatpush.msra.mxu0 0.0
  %71 = vmatpush.msra.mxu0 0.0
  %72 = vmatpush.msra.mxu0 0.0
  %73 = vmatpush.msra.mxu0 0.0
  %74 = vmatpush.msra.mxu0 0.0
  %75 = vmatpush.msra.mxu0 0.0
  %76 = vmatpush.msra.mxu0 0.0
  %77 = vmatpush.msra.mxu0 0.0
  %78 = vmatpush.msra.mxu0 %v58
  %79 = vmatpush.msra.mxu0 %v57
  %80 = vmatpush.msra.mxu0 %v56
  %81 = vmatpush.msra.mxu0 %v55
  %82 = vmatmul.f32.gmra.mxu0 %v64
  %v83 = vpop.f32.mrf.mxu0
  %v84 = vadd.f32 %v61, %v83
  %85 = vdwg.mxu0
  %vm86 = vcmask 23552
  %87 = vst.msk [vmem:[%s5] sm:$0xff] %vm86, %v84
  // Predicated region
  $region22: #{bert_classifier_forward.23} parent=0 // pred_check
    _
  $region23: #{bert_classifier_forward.23} parent=0 // pred_check_branch
    %89 = sbr.rel (0) target = $region25
  $region24: #{bert_classifier_forward.23} parent=0 // pred_region
    _
  $region25: #{bert_classifier_forward.23} parent=0 // pred_fallthru
    _
  // Predicated region
  $region26: #{bert_classifier_forward.23} parent=0 // pred_check
    _
  $region27: #{bert_classifier_forward.23} parent=0 // pred_check_branch
    %91 = sbr.rel (0) target = $region29
  $region28: #{bert_classifier_forward.23} parent=0 // pred_region
    _
  $region29: #{bert_classifier_forward.23} parent=0 // pred_fallthru
    _

</llo_original>
